<compile_context>
chip_gen: v6e
topology: v6e:2x2x1
jax: 0.10.0
libtpu: 0.0.40
codegen_flags: <defaults>
</compile_context>

<pallas_src>
import jax
import jax.numpy as jnp
from jax.experimental import pallas as pl
from jax.experimental.pallas import tpu as pltpu


# ---------------------------------------------------------------------------
# Kernel
# ---------------------------------------------------------------------------
def _make_basic_kernel(H, W, Cin, Cout, images_per_step):
    """Fused 3x (conv3x3 + ReLU); `images_per_step` images per grid step."""
    WCin = W * Cin
    WCo = W * Cout
    LW = max(WCin, WCo)          # scratch lane width (>= both layer widths)

    def kernel(x_ref, w1_ref, b1_ref, w2_ref, b2_ref, w3_ref, b3_ref,
               o_ref, pad_scr):
        # Hoisted (not re-broadcast per image/layer).
        zero_row = jnp.zeros((1, LW), jnp.float32)
        b1 = b1_ref[...]
        b2 = b2_ref[...]
        b3 = b3_ref[...]

        def conv_relu(w_ref, bias, k_width):
            # Three MXU dots on sublane-shifted views of the zero-bordered
            # scratch; single f32 accumulator. Horizontal SAME padding lives
            # in the band matrices (zero entries), so reads/stores stay at
            # lane offset 0 (no lane rotate, no masked lane stores).
            y = jnp.dot(pad_scr[pl.ds(0, H), pl.ds(0, k_width)], w_ref[0],
                        preferred_element_type=jnp.float32)
            y = y + jnp.dot(pad_scr[pl.ds(1, H), pl.ds(0, k_width)], w_ref[1],
                            preferred_element_type=jnp.float32)
            y = y + jnp.dot(pad_scr[pl.ds(2, H), pl.ds(0, k_width)], w_ref[2],
                            preferred_element_type=jnp.float32)
            return jnp.maximum(y + bias, 0.0)            # (H, WCo) f32

        # Static unroll: amortizes per-grid-step overhead over several images.
        for img in range(images_per_step):
            # Zero ONLY the two vertical pad rows; the interior is fully
            # overwritten below (per-image, so it is also per-core safe).
            pad_scr[pl.ds(0, 1), :] = zero_row
            pad_scr[pl.ds(H + 1, 1), :] = zero_row

            # In-kernel "SAME" vertical padding for layer 1: copy the
            # unpadded (H, W*Cin) input block into the scratch interior.
            pad_scr[pl.ds(1, H), pl.ds(0, WCin)] = x_ref[img].astype(jnp.float32)

            # ---- layer 1 ----
            y = conv_relu(w1_ref, b1, WCin)
            pad_scr[pl.ds(1, H), pl.ds(0, WCo)] = y      # lane-0, lane-dense

            # ---- layer 2 ----
            y = conv_relu(w2_ref, b2, WCo)
            pad_scr[pl.ds(1, H), pl.ds(0, WCo)] = y

            # ---- layer 3 ----
            y = conv_relu(w3_ref, b3, WCo)
            o_ref[img] = y.astype(o_ref.dtype)           # lane-dense (H, W*Cout)

    return kernel


# ---------------------------------------------------------------------------
# Wrapper-side weight preprocessing
# ---------------------------------------------------------------------------
def _band_weight_taps(w_hwio, W):
    """HWIO (3,3,Cin,Cout) -> per-tap band matrices (3, W*Cin, W*Cout).

    B[dy, j*Cin + c, w*Cout + o] = w[dy, j - w + 1, c, o] if 0 <= j-w+1 < 3
    else 0, so  x_packed @ B[dy]  applies kernel row dy of the 3x3 "SAME"
    conv on the lane-packed (row, W*C) layout. Horizontal zero-padding is
    realised by the zero band entries, keeping activations at lane offset 0.
    """
    kh, kw, Cin, Cout = w_hwio.shape
    jj = jnp.arange(W).reshape(W, 1, 1, 1)        # input pixel
    cc = jnp.arange(Cin).reshape(1, Cin, 1, 1)
    ww = jnp.arange(W).reshape(1, 1, W, 1)        # output pixel
    oo = jnp.arange(Cout).reshape(1, 1, 1, Cout)
    kx = jj - ww + 1
    valid = (kx >= 0) & (kx < kw)
    kx_c = jnp.clip(kx, 0, kw - 1)
    taps = []
    for dy in range(kh):
        g = w_hwio[dy, kx_c, cc, oo]              # (W, Cin, W, Cout)
        taps.append(jnp.where(valid, g, jnp.zeros((), w_hwio.dtype)))
    return jnp.stack(taps).reshape(kh, W * Cin, W * Cout)


def _choose_batching(N, max_images_per_step=8):
    """Images per grid step: amortize per-step overhead, but keep the grid
    length a multiple of 2 so both v7x TensorCores get work (v5e/v6e: no-op)."""
    best = 1
    for nb in range(1, min(N, max_images_per_step) + 1):
        if N % nb == 0 and (N // nb) % 2 == 0:
            best = nb
    return N // best, best


@jax.jit
def basic_forward_nchw(x_nchw, w1, b1, w2, b2, w3, b3):
    """Forward of Basic (default flags: no channel/spatial attention).

    x_nchw: (N, Cin, H, W)  -> returns (N, Cout, H, W)
    """
    N, Cin, H, W = x_nchw.shape
    Cout = w1.shape[-1]
    WCin, WCo = W * Cin, W * Cout
    LW = max(WCin, WCo)

    # NCHW -> NHWC, lane-pack (W, C) -> W*C. No host-side spatial padding:
    # vertical padding is done in-kernel, horizontal padding is in the bands.
    xp = jnp.transpose(x_nchw, (0, 2, 3, 1)).reshape(N, H, WCin)

    wt1 = _band_weight_taps(w1, W)                # (3, W*Cin,  W*Cout)
    wt2 = _band_weight_taps(w2, W)                # (3, W*Cout, W*Cout)
    wt3 = _band_weight_taps(w3, W)
    bt1 = jnp.tile(b1, W).reshape(1, WCo)         # lane-tiled biases
    bt2 = jnp.tile(b2, W).reshape(1, WCo)
    bt3 = jnp.tile(b3, W).reshape(1, WCo)

    grid_steps, nb = _choose_batching(N)
    kernel = _make_basic_kernel(H, W, Cin, Cout, nb)

    out = pl.pallas_call(
        kernel,
        out_shape=jax.ShapeDtypeStruct((N, H, WCo), x_nchw.dtype),
        grid_spec=pltpu.PrefetchScalarGridSpec(
            num_scalar_prefetch=0,
            grid=(grid_steps,),
            in_specs=[
                pl.BlockSpec((nb, H, WCin), lambda g: (g, 0, 0)),
                pl.BlockSpec((3, WCin, WCo), lambda g: (0, 0, 0)),
                pl.BlockSpec((1, WCo), lambda g: (0, 0)),
                pl.BlockSpec((3, WCo, WCo), lambda g: (0, 0, 0)),
                pl.BlockSpec((1, WCo), lambda g: (0, 0)),
                pl.BlockSpec((3, WCo, WCo), lambda g: (0, 0, 0)),
                pl.BlockSpec((1, WCo), lambda g: (0, 0)),
            ],
            out_specs=pl.BlockSpec((nb, H, WCo), lambda g: (g, 0, 0)),
            scratch_shapes=[
                pltpu.VMEM((H + 2, LW), jnp.float32),   # zero-bordered activation
            ],
        ),
        compiler_params=pltpu.CompilerParams(
            dimension_semantics=("parallel",),
            vmem_limit_bytes=32 * 1024 * 1024,
        ),
    )(xp, wt1, bt1, wt2, bt2, wt3, bt3)

    out = out.reshape(N, H, W, Cout)
    return jnp.transpose(out, (0, 3, 1, 2))


# ---------------------------------------------------------------------------
# Params / reference / main
# ---------------------------------------------------------------------------
def init_basic_params(key, in_ch, out_ch):
    """Deterministic parameter init for Basic(in_ch, out_ch). HWIO weights."""
    keys = jax.random.split(key, 6)
    chans = [(in_ch, out_ch), (out_ch, out_ch), (out_ch, out_ch)]
    params = []
    for i, (ci, co) in enumerate(chans):
        fan_in = ci * 3 * 3
        bound = 1.0 / jnp.sqrt(fan_in)
        w = jax.random.uniform(keys[2 * i], (3, 3, ci, co),
                               minval=-bound, maxval=bound, dtype=jnp.float32)
        bb = jax.random.uniform(keys[2 * i + 1], (co,),
                                minval=-bound, maxval=bound, dtype=jnp.float32)
        params.append((w, bb))
    return params


def _reference_nchw(x_nchw, params):
    """Pure-JAX reference using lax.conv_general_dilated (sanity check)."""
    x = x_nchw
    for w_hwio, b in params:
        y = jax.lax.conv_general_dilated(
            x, w_hwio,
            window_strides=(1, 1), padding="SAME",
            dimension_numbers=("NCHW", "HWIO", "NCHW"),
        )
        x = jnp.maximum(y + b[None, :, None, None], 0.0)
    return x


if __name__ == "__main__":
    key = jax.random.PRNGKey(0)
    k_x, k_p = jax.random.split(key)

    N, in_ch, out_ch, H, W = 2, 4, 8, 16, 16
    x = jax.random.normal(k_x, (N, in_ch, H, W), dtype=jnp.float32)

    params = init_basic_params(k_p, in_ch, out_ch)
    (w1, b1), (w2, b2), (w3, b3) = params

    out = basic_forward_nchw(x, w1, b1, w2, b2, w3, b3)
    out = jax.block_until_ready(out)

    ref = jax.block_until_ready(_reference_nchw(x, params))
    assert out.shape == (N, out_ch, H, W)
    assert jnp.allclose(out, ref, atol=1e-3, rtol=1e-3), "mismatch vs reference"

    print("KERNEL_OK")
</pallas_src>

<mosaic_0001>
module attributes {stable_mosaic.version = 11 : i64} {
  func.func @kernel(%arg0: i32, %arg1: memref<1x16x64xf32, #tpu.memory_space<vmem>>, %arg2: memref<3x64x128xf32, #tpu.memory_space<vmem>>, %arg3: memref<1x128xf32, #tpu.memory_space<vmem>>, %arg4: memref<3x128x128xf32, #tpu.memory_space<vmem>>, %arg5: memref<1x128xf32, #tpu.memory_space<vmem>>, %arg6: memref<3x128x128xf32, #tpu.memory_space<vmem>>, %arg7: memref<1x128xf32, #tpu.memory_space<vmem>>, %arg8: memref<1x16x128xf32, #tpu.memory_space<vmem>>, %arg9: memref<18x128xf32, #tpu.memory_space<vmem>>) attributes {dimension_semantics = [#tpu.dimension_semantics<parallel>], iteration_bounds = array<i64: 2>, scalar_prefetch = 0 : i64, scratch_operands = 1 : i64, tpu.core_type = #tpu.core_type<tc>, window_params = [{transform_indices = @transform_0, window_bounds = array<i64: 1, 16, 64>}, {pipeline_mode = #tpu.pipeline_mode<synchronous>, transform_indices = @transform_1, window_bounds = array<i64: 3, 64, 128>}, {pipeline_mode = #tpu.pipeline_mode<synchronous>, transform_indices = @transform_2, window_bounds = array<i64: 1, 128>}, {pipeline_mode = #tpu.pipeline_mode<synchronous>, transform_indices = @transform_3, window_bounds = array<i64: 3, 128, 128>}, {pipeline_mode = #tpu.pipeline_mode<synchronous>, transform_indices = @transform_4, window_bounds = array<i64: 1, 128>}, {pipeline_mode = #tpu.pipeline_mode<synchronous>, transform_indices = @transform_5, window_bounds = array<i64: 3, 128, 128>}, {pipeline_mode = #tpu.pipeline_mode<synchronous>, transform_indices = @transform_6, window_bounds = array<i64: 1, 128>}, {transform_indices = @transform_7, window_bounds = array<i64: 1, 16, 128>}]} {
    %cst = arith.constant 0.000000e+00 : f32
    %0 = vector.broadcast %cst : f32 to vector<1x128xf32>
    %c0 = arith.constant 0 : index
    %c0_0 = arith.constant 0 : index
    %1 = vector.load %arg3[%c0, %c0_0] : memref<1x128xf32, #tpu.memory_space<vmem>>, vector<1x128xf32>
    %c0_1 = arith.constant 0 : index
    %c0_2 = arith.constant 0 : index
    %2 = vector.load %arg5[%c0_1, %c0_2] : memref<1x128xf32, #tpu.memory_space<vmem>>, vector<1x128xf32>
    %c0_3 = arith.constant 0 : index
    %c0_4 = arith.constant 0 : index
    %3 = vector.load %arg7[%c0_3, %c0_4] : memref<1x128xf32, #tpu.memory_space<vmem>>, vector<1x128xf32>
    %c0_5 = arith.constant 0 : index
    %c0_6 = arith.constant 0 : index
    %4 = vector.load %arg9[%c0_5, %c0_6] : memref<18x128xf32, #tpu.memory_space<vmem>>, vector<1x128xf32>
    tpu.vector_store %arg9[%c0_5, %c0_6], %0 {strides = array<i32>} : memref<18x128xf32, #tpu.memory_space<vmem>>, vector<1x128xf32>,
    %c17 = arith.constant 17 : index
    %c0_7 = arith.constant 0 : index
    %5 = vector.load %arg9[%c17, %c0_7] : memref<18x128xf32, #tpu.memory_space<vmem>>, vector<1x128xf32>
    tpu.vector_store %arg9[%c17, %c0_7], %0 {strides = array<i32>} : memref<18x128xf32, #tpu.memory_space<vmem>>, vector<1x128xf32>,
    %c0_8 = arith.constant 0 : index
    %c0_9 = arith.constant 0 : index
    %c0_10 = arith.constant 0 : index
    %6 = vector.load %arg1[%c0_8, %c0_9, %c0_10] : memref<1x16x64xf32, #tpu.memory_space<vmem>>, vector<1x16x64xf32>
    %7 = vector.shape_cast %6 : vector<1x16x64xf32> to vector<16x64xf32>
    %c1 = arith.constant 1 : index
    %c0_11 = arith.constant 0 : index
    %8 = vector.load %arg9[%c1, %c0_11] : memref<18x128xf32, #tpu.memory_space<vmem>>, vector<16x64xf32>
    tpu.vector_store %arg9[%c1, %c0_11], %7 {strides = array<i32>} : memref<18x128xf32, #tpu.memory_space<vmem>>, vector<16x64xf32>,
    %c0_12 = arith.constant 0 : index
    %c0_13 = arith.constant 0 : index
    %9 = vector.load %arg9[%c0_12, %c0_13] : memref<18x128xf32, #tpu.memory_space<vmem>>, vector<16x64xf32>
    %c0_14 = arith.constant 0 : index
    %c0_15 = arith.constant 0 : index
    %c0_16 = arith.constant 0 : index
    %10 = vector.load %arg2[%c0_14, %c0_15, %c0_16] : memref<3x64x128xf32, #tpu.memory_space<vmem>>, vector<1x64x128xf32>
    %11 = vector.shape_cast %10 : vector<1x64x128xf32> to vector<64x128xf32>
    %cst_17 = arith.constant dense<0.000000e+00> : vector<16x128xf32>
    %12 = tpu.matmul %9, %11, %cst_17 {dimension_numbers = #tpu.dot_dimension_numbers<[1], [0], [0], [1], [0, 0, 1, 1], [], []>} : vector<16x64xf32>, vector<64x128xf32>, vector<16x128xf32> -> vector<16x128xf32>
    %c1_18 = arith.constant 1 : index
    %c0_19 = arith.constant 0 : index
    %13 = vector.load %arg9[%c1_18, %c0_19] : memref<18x128xf32, #tpu.memory_space<vmem>>, vector<16x64xf32>
    %c1_20 = arith.constant 1 : index
    %c0_21 = arith.constant 0 : index
    %c0_22 = arith.constant 0 : index
    %14 = vector.load %arg2[%c1_20, %c0_21, %c0_22] : memref<3x64x128xf32, #tpu.memory_space<vmem>>, vector<1x64x128xf32>
    %15 = vector.shape_cast %14 : vector<1x64x128xf32> to vector<64x128xf32>
    %cst_23 = arith.constant dense<0.000000e+00> : vector<16x128xf32>
    %16 = tpu.matmul %13, %15, %cst_23 {dimension_numbers = #tpu.dot_dimension_numbers<[1], [0], [0], [1], [0, 0, 1, 1], [], []>} : vector<16x64xf32>, vector<64x128xf32>, vector<16x128xf32> -> vector<16x128xf32>
    %17 = arith.addf %12, %16 : vector<16x128xf32>
    %c2 = arith.constant 2 : index
    %c0_24 = arith.constant 0 : index
    %18 = vector.load %arg9[%c2, %c0_24] : memref<18x128xf32, #tpu.memory_space<vmem>>, vector<16x64xf32>
    %c2_25 = arith.constant 2 : index
    %c0_26 = arith.constant 0 : index
    %c0_27 = arith.constant 0 : index
    %19 = vector.load %arg2[%c2_25, %c0_26, %c0_27] : memref<3x64x128xf32, #tpu.memory_space<vmem>>, vector<1x64x128xf32>
    %20 = vector.shape_cast %19 : vector<1x64x128xf32> to vector<64x128xf32>
    %cst_28 = arith.constant dense<0.000000e+00> : vector<16x128xf32>
    %21 = tpu.matmul %18, %20, %cst_28 {dimension_numbers = #tpu.dot_dimension_numbers<[1], [0], [0], [1], [0, 0, 1, 1], [], []>} : vector<16x64xf32>, vector<64x128xf32>, vector<16x128xf32> -> vector<16x128xf32>
    %22 = arith.addf %17, %21 : vector<16x128xf32>
    %23 = vector.broadcast %1 : vector<1x128xf32> to vector<16x128xf32>
    %24 = arith.addf %22, %23 : vector<16x128xf32>
    %cst_29 = arith.constant 0.000000e+00 : f32
    %25 = vector.broadcast %cst_29 : f32 to vector<16x128xf32>
    %26 = arith.maximumf %24, %25 : vector<16x128xf32>
    %c1_30 = arith.constant 1 : index
    %c0_31 = arith.constant 0 : index
    %27 = vector.load %arg9[%c1_30, %c0_31] : memref<18x128xf32, #tpu.memory_space<vmem>>, vector<16x128xf32>
    tpu.vector_store %arg9[%c1_30, %c0_31], %26 {strides = array<i32>} : memref<18x128xf32, #tpu.memory_space<vmem>>, vector<16x128xf32>,
    %c0_32 = arith.constant 0 : index
    %c0_33 = arith.constant 0 : index
    %28 = vector.load %arg9[%c0_32, %c0_33] : memref<18x128xf32, #tpu.memory_space<vmem>>, vector<16x128xf32>
    %c0_34 = arith.constant 0 : index
    %c0_35 = arith.constant 0 : index
    %c0_36 = arith.constant 0 : index
    %29 = vector.load %arg4[%c0_34, %c0_35, %c0_36] : memref<3x128x128xf32, #tpu.memory_space<vmem>>, vector<1x128x128xf32>
    %30 = vector.shape_cast %29 : vector<1x128x128xf32> to vector<128x128xf32>
    %cst_37 = arith.constant dense<0.000000e+00> : vector<16x128xf32>
    %31 = tpu.matmul %28, %30, %cst_37 {dimension_numbers = #tpu.dot_dimension_numbers<[1], [0], [0], [1], [0, 0, 1, 1], [], []>} : vector<16x128xf32>, vector<128x128xf32>, vector<16x128xf32> -> vector<16x128xf32>
    %c1_38 = arith.constant 1 : index
    %c0_39 = arith.constant 0 : index
    %32 = vector.load %arg9[%c1_38, %c0_39] : memref<18x128xf32, #tpu.memory_space<vmem>>, vector<16x128xf32>
    %c1_40 = arith.constant 1 : index
    %c0_41 = arith.constant 0 : index
    %c0_42 = arith.constant 0 : index
    %33 = vector.load %arg4[%c1_40, %c0_41, %c0_42] : memref<3x128x128xf32, #tpu.memory_space<vmem>>, vector<1x128x128xf32>
    %34 = vector.shape_cast %33 : vector<1x128x128xf32> to vector<128x128xf32>
    %cst_43 = arith.constant dense<0.000000e+00> : vector<16x128xf32>
    %35 = tpu.matmul %32, %34, %cst_43 {dimension_numbers = #tpu.dot_dimension_numbers<[1], [0], [0], [1], [0, 0, 1, 1], [], []>} : vector<16x128xf32>, vector<128x128xf32>, vector<16x128xf32> -> vector<16x128xf32>
    %36 = arith.addf %31, %35 : vector<16x128xf32>
    %c2_44 = arith.constant 2 : index
    %c0_45 = arith.constant 0 : index
    %37 = vector.load %arg9[%c2_44, %c0_45] : memref<18x128xf32, #tpu.memory_space<vmem>>, vector<16x128xf32>
    %c2_46 = arith.constant 2 : index
    %c0_47 = arith.constant 0 : index
    %c0_48 = arith.constant 0 : index
    %38 = vector.load %arg4[%c2_46, %c0_47, %c0_48] : memref<3x128x128xf32, #tpu.memory_space<vmem>>, vector<1x128x128xf32>
    %39 = vector.shape_cast %38 : vector<1x128x128xf32> to vector<128x128xf32>
    %cst_49 = arith.constant dense<0.000000e+00> : vector<16x128xf32>
    %40 = tpu.matmul %37, %39, %cst_49 {dimension_numbers = #tpu.dot_dimension_numbers<[1], [0], [0], [1], [0, 0, 1, 1], [], []>} : vector<16x128xf32>, vector<128x128xf32>, vector<16x128xf32> -> vector<16x128xf32>
    %41 = arith.addf %36, %40 : vector<16x128xf32>
    %42 = vector.broadcast %2 : vector<1x128xf32> to vector<16x128xf32>
    %43 = arith.addf %41, %42 : vector<16x128xf32>
    %cst_50 = arith.constant 0.000000e+00 : f32
    %44 = vector.broadcast %cst_50 : f32 to vector<16x128xf32>
    %45 = arith.maximumf %43, %44 : vector<16x128xf32>
    %c1_51 = arith.constant 1 : index
    %c0_52 = arith.constant 0 : index
    %46 = vector.load %arg9[%c1_51, %c0_52] : memref<18x128xf32, #tpu.memory_space<vmem>>, vector<16x128xf32>
    tpu.vector_store %arg9[%c1_51, %c0_52], %45 {strides = array<i32>} : memref<18x128xf32, #tpu.memory_space<vmem>>, vector<16x128xf32>,
    %c0_53 = arith.constant 0 : index
    %c0_54 = arith.constant 0 : index
    %47 = vector.load %arg9[%c0_53, %c0_54] : memref<18x128xf32, #tpu.memory_space<vmem>>, vector<16x128xf32>
    %c0_55 = arith.constant 0 : index
    %c0_56 = arith.constant 0 : index
    %c0_57 = arith.constant 0 : index
    %48 = vector.load %arg6[%c0_55, %c0_56, %c0_57] : memref<3x128x128xf32, #tpu.memory_space<vmem>>, vector<1x128x128xf32>
    %49 = vector.shape_cast %48 : vector<1x128x128xf32> to vector<128x128xf32>
    %cst_58 = arith.constant dense<0.000000e+00> : vector<16x128xf32>
    %50 = tpu.matmul %47, %49, %cst_58 {dimension_numbers = #tpu.dot_dimension_numbers<[1], [0], [0], [1], [0, 0, 1, 1], [], []>} : vector<16x128xf32>, vector<128x128xf32>, vector<16x128xf32> -> vector<16x128xf32>
    %c1_59 = arith.constant 1 : index
    %c0_60 = arith.constant 0 : index
    %51 = vector.load %arg9[%c1_59, %c0_60] : memref<18x128xf32, #tpu.memory_space<vmem>>, vector<16x128xf32>
    %c1_61 = arith.constant 1 : index
    %c0_62 = arith.constant 0 : index
    %c0_63 = arith.constant 0 : index
    %52 = vector.load %arg6[%c1_61, %c0_62, %c0_63] : memref<3x128x128xf32, #tpu.memory_space<vmem>>, vector<1x128x128xf32>
    %53 = vector.shape_cast %52 : vector<1x128x128xf32> to vector<128x128xf32>
    %cst_64 = arith.constant dense<0.000000e+00> : vector<16x128xf32>
    %54 = tpu.matmul %51, %53, %cst_64 {dimension_numbers = #tpu.dot_dimension_numbers<[1], [0], [0], [1], [0, 0, 1, 1], [], []>} : vector<16x128xf32>, vector<128x128xf32>, vector<16x128xf32> -> vector<16x128xf32>
    %55 = arith.addf %50, %54 : vector<16x128xf32>
    %c2_65 = arith.constant 2 : index
    %c0_66 = arith.constant 0 : index
    %56 = vector.load %arg9[%c2_65, %c0_66] : memref<18x128xf32, #tpu.memory_space<vmem>>, vector<16x128xf32>
    %c2_67 = arith.constant 2 : index
    %c0_68 = arith.constant 0 : index
    %c0_69 = arith.constant 0 : index
    %57 = vector.load %arg6[%c2_67, %c0_68, %c0_69] : memref<3x128x128xf32, #tpu.memory_space<vmem>>, vector<1x128x128xf32>
    %58 = vector.shape_cast %57 : vector<1x128x128xf32> to vector<128x128xf32>
    %cst_70 = arith.constant dense<0.000000e+00> : vector<16x128xf32>
    %59 = tpu.matmul %56, %58, %cst_70 {dimension_numbers = #tpu.dot_dimension_numbers<[1], [0], [0], [1], [0, 0, 1, 1], [], []>} : vector<16x128xf32>, vector<128x128xf32>, vector<16x128xf32> -> vector<16x128xf32>
    %60 = arith.addf %55, %59 : vector<16x128xf32>
    %61 = vector.broadcast %3 : vector<1x128xf32> to vector<16x128xf32>
    %62 = arith.addf %60, %61 : vector<16x128xf32>
    %cst_71 = arith.constant 0.000000e+00 : f32
    %63 = vector.broadcast %cst_71 : f32 to vector<16x128xf32>
    %64 = arith.maximumf %62, %63 : vector<16x128xf32>
    %c0_72 = arith.constant 0 : index
    %c0_73 = arith.constant 0 : index
    %c0_74 = arith.constant 0 : index
    %65 = vector.load %arg8[%c0_72, %c0_73, %c0_74] : memref<1x16x128xf32, #tpu.memory_space<vmem>>, vector<1x16x128xf32>
    %66 = vector.shape_cast %65 : vector<1x16x128xf32> to vector<16x128xf32>
    %67 = vector.shape_cast %64 : vector<16x128xf32> to vector<1x16x128xf32>
    tpu.vector_store %arg8[%c0_72, %c0_73, %c0_74], %67 {strides = array<i32>} : memref<1x16x128xf32, #tpu.memory_space<vmem>>, vector<1x16x128xf32>,
    return
  }
  func.func @transform_0(%arg0: i32) -> (i32, i32, i32) {
    %c0_i32 = arith.constant 0 : i32
    %c0_i32_0 = arith.constant 0 : i32
    %c0_i32_1 = arith.constant 0 : i32
    return %arg0, %c0_i32, %c0_i32_0 : i32, i32, i32
  }
  func.func @transform_1(%arg0: i32) -> (i32, i32, i32) {
    %c0_i32 = arith.constant 0 : i32
    %c0_i32_0 = arith.constant 0 : i32
    %c0_i32_1 = arith.constant 0 : i32
    %c0_i32_2 = arith.constant 0 : i32
    return %c0_i32, %c0_i32_0, %c0_i32_1 : i32, i32, i32
  }
  func.func @transform_2(%arg0: i32) -> (i32, i32) {
    %c0_i32 = arith.constant 0 : i32
    %c0_i32_0 = arith.constant 0 : i32
    %c0_i32_1 = arith.constant 0 : i32
    return %c0_i32, %c0_i32_0 : i32, i32
  }
  func.func @transform_3(%arg0: i32) -> (i32, i32, i32) {
    %c0_i32 = arith.constant 0 : i32
    %c0_i32_0 = arith.constant 0 : i32
    %c0_i32_1 = arith.constant 0 : i32
    %c0_i32_2 = arith.constant 0 : i32
    return %c0_i32, %c0_i32_0, %c0_i32_1 : i32, i32, i32
  }
  func.func @transform_4(%arg0: i32) -> (i32, i32) {
    %c0_i32 = arith.constant 0 : i32
    %c0_i32_0 = arith.constant 0 : i32
    %c0_i32_1 = arith.constant 0 : i32
    return %c0_i32, %c0_i32_0 : i32, i32
  }
  func.func @transform_5(%arg0: i32) -> (i32, i32, i32) {
    %c0_i32 = arith.constant 0 : i32
    %c0_i32_0 = arith.constant 0 : i32
    %c0_i32_1 = arith.constant 0 : i32
    %c0_i32_2 = arith.constant 0 : i32
    return %c0_i32, %c0_i32_0, %c0_i32_1 : i32, i32, i32
  }
  func.func @transform_6(%arg0: i32) -> (i32, i32) {
    %c0_i32 = arith.constant 0 : i32
    %c0_i32_0 = arith.constant 0 : i32
    %c0_i32_1 = arith.constant 0 : i32
    return %c0_i32, %c0_i32_0 : i32, i32
  }
  func.func @transform_7(%arg0: i32) -> (i32, i32, i32) {
    %c0_i32 = arith.constant 0 : i32
    %c0_i32_0 = arith.constant 0 : i32
    %c0_i32_1 = arith.constant 0 : i32
    return %arg0, %c0_i32, %c0_i32_0 : i32, i32, i32
  }
}

</mosaic_0001>

<llo_original>
// kernel: tile.18
$region0: #{tile.18}
  #allocation0 [shape = 's32[1]{0}', space=sflag, size = 0x4, scoped, tag = 'scoped memory for tile.18']
  %s0 = inlined_call_operand.vmem [shape: f32[8], index: 0, kind: input, shape index: {}]
  %s1 = inlined_call_operand.vmem [shape: f32[16,8], index: 1, kind: output, shape index: {}]
  // Predicated region
  $region2: #{tile.18} parent=0 // pred_check
    _
  $region3: #{tile.18} parent=0 // pred_check_branch
    %3 = sbr.rel (0) target = $region5
  $region4: #{tile.18} parent=0 // pred_region
    _
  $region5: #{tile.18} parent=0 // pred_fallthru
    _
  %v4 = vld [vmem:[%s0] ss:$0 sm:$0xff]
  %5 = vst [vmem:[%s1] sm:$0xff] %v4
  %s6 = scalar_lea.vmem %s1, 8
  %7 = vst [vmem:[%s6] sm:$0xff] %v4

// kernel: tile.19
$region0: #{tile.19}
  %s0 = inlined_call_operand.vmem [shape: f32[16,8], index: 0, kind: input, shape index: {}]
  %s1 = inlined_call_operand.vmem [shape: f32[1,128], index: 1, kind: output, shape index: {}]
  $region1: #{tile.19} parent=0
    #allocation0 [shape = 'u8[4096]{0}', space=vmem, size = 0x1000, scoped, tag = 'scoped mem for output reshape']
    %v2 = vld [vmem:[%s0] sm:$0x1]
    %vm3 = vcmask 64512
    %4 = vst.msk [vmem:[#allocation0] sm:$0x1] %vm3, %v2
    %s5 = scalar_lea.vmem %s0, 15
    %v6 = vld [vmem:[%s5] sm:$0x1]
    %7 = vrot.lane.b32.xlu0 %v6, 120
    %v8 = vpop.permute.xlu0 %7
    %vm9 = vcmask 1048512
    %10 = vst.msk [vmem:[#allocation0] sm:$0x1] %vm9, %v8
    %s11 = scalar_lea.vmem %s0, 14
    %v12 = vld [vmem:[%s11] sm:$0x1]
    %13 = vrot.lane.b32.xlu0 %v12, 112
    %v14 = vpop.permute.xlu0 %13
    %vm15 = vcmask 982912
    %16 = vst.msk [vmem:[#allocation0] sm:$0x1] %vm15, %v14
    %s17 = scalar_lea.vmem %s0, 13
    %v18 = vld [vmem:[%s17] sm:$0x1]
    %19 = vrot.lane.b32.xlu0 %v18, 104
    %v20 = vpop.permute.xlu0 %19
    %vm21 = vcmask 917312
    %22 = vst.msk [vmem:[#allocation0] sm:$0x1] %vm21, %v20
    %s23 = scalar_lea.vmem %s0, 12
    %v24 = vld [vmem:[%s23] sm:$0x1]
    %25 = vrot.lane.b32.xlu0 %v24, 96
    %v26 = vpop.permute.xlu0 %25
    %vm27 = vcmask 851712
    %28 = vst.msk [vmem:[#allocation0] sm:$0x1] %vm27, %v26
    %s29 = scalar_lea.vmem %s0, 11
    %v30 = vld [vmem:[%s29] sm:$0x1]
    %31 = vrot.lane.b32.xlu0 %v30, 88
    %v32 = vpop.permute.xlu0 %31
    %vm33 = vcmask 786112
    %34 = vst.msk [vmem:[#allocation0] sm:$0x1] %vm33, %v32
    %s35 = scalar_lea.vmem %s0, 10
    %v36 = vld [vmem:[%s35] sm:$0x1]
    %37 = vrot.lane.b32.xlu0 %v36, 80
    %v38 = vpop.permute.xlu0 %37
    %vm39 = vcmask 720512
    %40 = vst.msk [vmem:[#allocation0] sm:$0x1] %vm39, %v38
    %s41 = scalar_lea.vmem %s0, 9
    %v42 = vld [vmem:[%s41] sm:$0x1]
    %43 = vrot.lane.b32.xlu0 %v42, 72
    %v44 = vpop.permute.xlu0 %43
    %vm45 = vcmask 654912
    %46 = vst.msk [vmem:[#allocation0] sm:$0x1] %vm45, %v44
    %s47 = scalar_lea.vmem %s0, 8
    %v48 = vld [vmem:[%s47] sm:$0x1]
    %49 = vrot.lane.b32.xlu0 %v48, 64
    %v50 = vpop.permute.xlu0 %49
    %vm51 = vcmask 589312
    %52 = vst.msk [vmem:[#allocation0] sm:$0x1] %vm51, %v50
    %s53 = scalar_lea.vmem %s0, 7
    %v54 = vld [vmem:[%s53] sm:$0x1]
    %55 = vrot.lane.b32.xlu0 %v54, 56
    %v56 = vpop.permute.xlu0 %55
    %vm57 = vcmask 523712
    %58 = vst.msk [vmem:[#allocation0] sm:$0x1] %vm57, %v56
    %s59 = scalar_lea.vmem %s0, 6
    %v60 = vld [vmem:[%s59] sm:$0x1]
    %61 = vrot.lane.b32.xlu0 %v60, 48
    %v62 = vpop.permute.xlu0 %61
    %vm63 = vcmask 458112
    %64 = vst.msk [vmem:[#allocation0] sm:$0x1] %vm63, %v62
    %s65 = scalar_lea.vmem %s0, 5
    %v66 = vld [vmem:[%s65] sm:$0x1]
    %67 = vrot.lane.b32.xlu0 %v66, 40
    %v68 = vpop.permute.xlu0 %67
    %vm69 = vcmask 392512
    %70 = vst.msk [vmem:[#allocation0] sm:$0x1] %vm69, %v68
    %s71 = scalar_lea.vmem %s0, 4
    %v72 = vld [vmem:[%s71] sm:$0x1]
    %73 = vrot.lane.b32.xlu0 %v72, 32
    %v74 = vpop.permute.xlu0 %73
    %vm75 = vcmask 326912
    %76 = vst.msk [vmem:[#allocation0] sm:$0x1] %vm75, %v74
    %s77 = scalar_lea.vmem %s0, 3
    %v78 = vld [vmem:[%s77] sm:$0x1]
    %79 = vrot.lane.b32.xlu0 %v78, 24
    %v80 = vpop.permute.xlu0 %79
    %vm81 = vcmask 261312
    %82 = vst.msk [vmem:[#allocation0] sm:$0x1] %vm81, %v80
    %s83 = scalar_lea.vmem %s0, 2
    %v84 = vld [vmem:[%s83] sm:$0x1]
    %85 = vrot.lane.b32.xlu0 %v84, 16
    %v86 = vpop.permute.xlu0 %85
    %vm87 = vcmask 195712
    %88 = vst.msk [vmem:[#allocation0] sm:$0x1] %vm87, %v86
    %s89 = scalar_lea.vmem %s0, 1
    %v90 = vld [vmem:[%s89] sm:$0x1]
    %91 = vrot.lane.b32.xlu0 %v90, 8
    %v92 = vpop.permute.xlu0 %91
    %vm93 = vcmask 130112
    %94 = vst.msk [vmem:[#allocation0] sm:$0x1] %vm93, %v92
    %s96 = sshll.u32 1, 1
    %s97 = ssub.s32 %s96, 1
    %v99 = vld [vmem:[#allocation0] sm:%s97]
    %s100 = sshll.u32 1, 1
    %s101 = ssub.s32 %s100, 1
    %102 = vst [vmem:[%s1] sm:%s101] %v99

// kernel: basic_forward_nchw.1
$region0: #{basic_forward_nchw.1}
  #allocation0 [shape = 'u32[]', space=smem, size = 0x4, offset = 0x4, fixed_abs, tag = 'smem constant byte address 0x4 - core index']
  #allocation1 [shape = 'u32[144,128]{1,0:T(1,128)}', space=vmem, size = 0x12000, scoped, tag = 'internal scratch']
  #allocation2 [shape = 'f32[18,128]{1,0:T(8,128)}', space=vmem, size = 0x3000, scoped, tag = 'scratch operand']
  %s0 = inlined_call_operand.vmem [shape: f32[2,16,64], index: 0, kind: input, shape index: {}]
  %s1 = inlined_call_operand.vmem [shape: f32[3,64,128], index: 1, kind: input, shape index: {}]
  %s2 = inlined_call_operand.vmem [shape: f32[1,128], index: 2, kind: input, shape index: {}]
  %s3 = inlined_call_operand.vmem [shape: f32[3,128,128], index: 3, kind: input, shape index: {}]
  %s4 = inlined_call_operand.vmem [shape: f32[1,128], index: 4, kind: input, shape index: {}]
  %s5 = inlined_call_operand.vmem [shape: f32[3,128,128], index: 5, kind: input, shape index: {}]
  %s6 = inlined_call_operand.vmem [shape: f32[1,128], index: 6, kind: input, shape index: {}]
  %s7 = inlined_call_operand.vmem [shape: f32[2,16,128], index: 7, kind: output, shape index: {}]
  %s8 = sld [smem:[#allocation0]]
  $region61: #{basic_forward_nchw.1} parent=0
    _
  %s10 = ssub.s32 1, %s8
  %s11 = scalar_select 0, %s10, %s8
  loop: start=0, step=1, limit=4
  $region2: #{basic_forward_nchw.1} parent=0 // loop_pre_header
    _
  $region3: #{basic_forward_nchw.1} parent=0 // loop_header
    %s13 = sphi 0, %s17
    %p14 = scmp.ge.s32.totalorder %s13, 4
    %s23 = sphi 0, %s25
    %s26 = sphi 0, %s23
    %s27 = sphi 0, %s26
    %s43 = sphi 0, %s27
    %s47 = sphi 0, %s47
    %s49 = sphi 0, %s47
    %s50 = sphi 0, %s49
    %s64 = sphi 0, %s50
    %s68 = sphi 0, %s68
    %s70 = sphi 0, %s68
    %s71 = sphi 0, %s70
    %s85 = sphi 0, %s71
    %s89 = sphi 0, %s89
    %s91 = sphi 0, %s89
    %s92 = sphi 0, %s91
    %s106 = sphi 0, %s92
    %s110 = sphi 0, %s110
    %s112 = sphi 0, %s110
    %s113 = sphi 0, %s112
    %s127 = sphi 0, %s113
    %s131 = sphi 0, %s131
    %s133 = sphi 0, %s131
    %s134 = sphi 0, %s133
    %s148 = sphi 0, %s134
    %s152 = sphi 0, %s152
    %s154 = sphi 0, %s152
    %s155 = sphi 0, %s154
    %s169 = sphi 0, %s155
    %s175 = sphi 0, %s177
    %s178 = sphi 0, %s175
    %s179 = sphi 0, %s178
    %s195 = sphi 0, %s179
  $region4: #{basic_forward_nchw.1} parent=0 // loop_header_branch
    %16 = sbr.rel (%p14) target = $region8
  $region5: #{basic_forward_nchw.1} parent=0 // loop_body
    %s18 = ssub.s32 %s13, 1
    %s19 = ssub.s32 %s13, 2
    %s20 = sadd.s32 %s13, 1
    %s21 = ssub.s32 %s13, %s20
    %p22 = scmp.eq.s32.totalorder %s21, 0
    %s24 = sadd.s32 %s23, 1
    %s25 = scalar_select %p22, %s23, %s24
    %p28 = pneg %p22
    %p29 = scmp.eq.s32.totalorder %s13, 1
    %p30 = por %p28, %p29
    %p31 = scmp.ne.s32.totalorder %s23, %s26
    %p32 = scmp.eq.s32.totalorder %s13, 0
    %p33 = por %p31, %p32
    %p34 = scmp.ne.s32.totalorder %s23, %s26
    %p35 = scmp.eq.s32.totalorder %s18, 1
    %p36 = por %p34, %p35
    %p37 = scmp.ne.s32.totalorder %s26, %s27
    %p38 = scmp.eq.s32.totalorder %s18, 0
    %p39 = por %p37, %p38
    %p40 = scmp.ne.s32.totalorder %s26, %s27
    %p41 = scmp.eq.s32.totalorder %s19, 1
    %p42 = por %p40, %p41
    %p44 = scmp.ne.s32.totalorder %s27, %s43
    %p45 = scmp.eq.s32.totalorder %s19, 0
    %p46 = por %p44, %p45
    %s48 = sadd.s32 %s47, 1
    %p51 = scmp.eq.s32.totalorder %s13, 1
    %p52 = scmp.ne.s32.totalorder %s47, %s49
    %p53 = scmp.eq.s32.totalorder %s13, 0
    %p54 = por %p52, %p53
    %p55 = scmp.ne.s32.totalorder %s47, %s49
    %p56 = scmp.eq.s32.totalorder %s18, 1
    %p57 = por %p55, %p56
    %p58 = scmp.ne.s32.totalorder %s49, %s50
    %p59 = scmp.eq.s32.totalorder %s18, 0
    %p60 = por %p58, %p59
    %p61 = scmp.ne.s32.totalorder %s49, %s50
    %p62 = scmp.eq.s32.totalorder %s19, 1
    %p63 = por %p61, %p62
    %p65 = scmp.ne.s32.totalorder %s50, %s64
    %p66 = scmp.eq.s32.totalorder %s19, 0
    %p67 = por %p65, %p66
    %s69 = sadd.s32 %s68, 1
    %p72 = scmp.eq.s32.totalorder %s13, 1
    %p73 = scmp.ne.s32.totalorder %s68, %s70
    %p74 = scmp.eq.s32.totalorder %s13, 0
    %p75 = por %p73, %p74
    %p76 = scmp.ne.s32.totalorder %s68, %s70
    %p77 = scmp.eq.s32.totalorder %s18, 1
    %p78 = por %p76, %p77
    %p79 = scmp.ne.s32.totalorder %s70, %s71
    %p80 = scmp.eq.s32.totalorder %s18, 0
    %p81 = por %p79, %p80
    %p82 = scmp.ne.s32.totalorder %s70, %s71
    %p83 = scmp.eq.s32.totalorder %s19, 1
    %p84 = por %p82, %p83
    %p86 = scmp.ne.s32.totalorder %s71, %s85
    %p87 = scmp.eq.s32.totalorder %s19, 0
    %p88 = por %p86, %p87
    %s90 = sadd.s32 %s89, 1
    %p93 = scmp.eq.s32.totalorder %s13, 1
    %p94 = scmp.ne.s32.totalorder %s89, %s91
    %p95 = scmp.eq.s32.totalorder %s13, 0
    %p96 = por %p94, %p95
    %p97 = scmp.ne.s32.totalorder %s89, %s91
    %p98 = scmp.eq.s32.totalorder %s18, 1
    %p99 = por %p97, %p98
    %p100 = scmp.ne.s32.totalorder %s91, %s92
    %p101 = scmp.eq.s32.totalorder %s18, 0
    %p102 = por %p100, %p101
    %p103 = scmp.ne.s32.totalorder %s91, %s92
    %p104 = scmp.eq.s32.totalorder %s19, 1
    %p105 = por %p103, %p104
    %p107 = scmp.ne.s32.totalorder %s92, %s106
    %p108 = scmp.eq.s32.totalorder %s19, 0
    %p109 = por %p107, %p108
    %s111 = sadd.s32 %s110, 1
    %p114 = scmp.eq.s32.totalorder %s13, 1
    %p115 = scmp.ne.s32.totalorder %s110, %s112
    %p116 = scmp.eq.s32.totalorder %s13, 0
    %p117 = por %p115, %p116
    %p118 = scmp.ne.s32.totalorder %s110, %s112
    %p119 = scmp.eq.s32.totalorder %s18, 1
    %p120 = por %p118, %p119
    %p121 = scmp.ne.s32.totalorder %s112, %s113
    %p122 = scmp.eq.s32.totalorder %s18, 0
    %p123 = por %p121, %p122
    %p124 = scmp.ne.s32.totalorder %s112, %s113
    %p125 = scmp.eq.s32.totalorder %s19, 1
    %p126 = por %p124, %p125
    %p128 = scmp.ne.s32.totalorder %s113, %s127
    %p129 = scmp.eq.s32.totalorder %s19, 0
    %p130 = por %p128, %p129
    %s132 = sadd.s32 %s131, 1
    %p135 = scmp.eq.s32.totalorder %s13, 1
    %p136 = scmp.ne.s32.totalorder %s131, %s133
    %p137 = scmp.eq.s32.totalorder %s13, 0
    %p138 = por %p136, %p137
    %p139 = scmp.ne.s32.totalorder %s131, %s133
    %p140 = scmp.eq.s32.totalorder %s18, 1
    %p141 = por %p139, %p140
    %p142 = scmp.ne.s32.totalorder %s133, %s134
    %p143 = scmp.eq.s32.totalorder %s18, 0
    %p144 = por %p142, %p143
    %p145 = scmp.ne.s32.totalorder %s133, %s134
    %p146 = scmp.eq.s32.totalorder %s19, 1
    %p147 = por %p145, %p146
    %p149 = scmp.ne.s32.totalorder %s134, %s148
    %p150 = scmp.eq.s32.totalorder %s19, 0
    %p151 = por %p149, %p150
    %s153 = sadd.s32 %s152, 1
    %p156 = scmp.eq.s32.totalorder %s13, 1
    %p157 = scmp.ne.s32.totalorder %s152, %s154
    %p158 = scmp.eq.s32.totalorder %s13, 0
    %p159 = por %p157, %p158
    %p160 = scmp.ne.s32.totalorder %s152, %s154
    %p161 = scmp.eq.s32.totalorder %s18, 1
    %p162 = por %p160, %p161
    %p163 = scmp.ne.s32.totalorder %s154, %s155
    %p164 = scmp.eq.s32.totalorder %s18, 0
    %p165 = por %p163, %p164
    %p166 = scmp.ne.s32.totalorder %s154, %s155
    %p167 = scmp.eq.s32.totalorder %s19, 1
    %p168 = por %p166, %p167
    %p170 = scmp.ne.s32.totalorder %s155, %s169
    %p171 = scmp.eq.s32.totalorder %s19, 0
    %p172 = por %p170, %p171
    %s173 = ssub.s32 %s13, %s20
    %p174 = scmp.eq.s32.totalorder %s173, 0
    %s176 = sadd.s32 %s175, 1
    %s177 = scalar_select %p174, %s175, %s176
    %p180 = pneg %p174
    %p181 = scmp.eq.s32.totalorder %s13, 1
    %p182 = por %p180, %p181
    %p183 = scmp.ne.s32.totalorder %s175, %s178
    %p184 = scmp.eq.s32.totalorder %s13, 0
    %p185 = por %p183, %p184
    %p186 = scmp.ne.s32.totalorder %s175, %s178
    %p187 = scmp.eq.s32.totalorder %s18, 1
    %p188 = por %p186, %p187
    %p189 = scmp.ne.s32.totalorder %s178, %s179
    %p190 = scmp.eq.s32.totalorder %s18, 0
    %p191 = por %p189, %p190
    %p192 = scmp.ne.s32.totalorder %s178, %s179
    %p193 = scmp.eq.s32.totalorder %s19, 1
    %p194 = por %p192, %p193
    %p196 = scmp.ne.s32.totalorder %s179, %s195
    %p197 = scmp.eq.s32.totalorder %s19, 0
    %p198 = por %p196, %p197
    %p199 = scmp.le.s32.totalorder 1, %s13
    %p200 = scmp.lt.s32.totalorder %s13, 3
    %p201 = pnand %p199, %p200
    %p202 = pneg %p201
    // Predicated region
    $region9: #{basic_forward_nchw.1} parent=5 // pred_check
      _
    $region10: #{basic_forward_nchw.1} parent=5 // pred_check_branch
      %204 = sbr.rel (%p201) target = $region12
    $region11: #{basic_forward_nchw.1} parent=5 // pred_region
      %s205 = ssub.s32 %s13, 1
      // Predicated region
      $region13: #{basic_forward_nchw.1} parent=11 // pred_check
        %p206 = pneg %p60
      $region14: #{basic_forward_nchw.1} parent=11 // pred_check_branch
        %208 = sbr.rel (%p206) target = $region16
      $region15: #{basic_forward_nchw.1} parent=11 // pred_region
        _
      $region16: #{basic_forward_nchw.1} parent=11 // pred_fallthru
        _
      // Predicated region
      $region17: #{basic_forward_nchw.1} parent=11 // pred_check
        %p209 = pneg %p81
      $region18: #{basic_forward_nchw.1} parent=11 // pred_check_branch
        %211 = sbr.rel (%p209) target = $region20
      $region19: #{basic_forward_nchw.1} parent=11 // pred_region
        _
      $region20: #{basic_forward_nchw.1} parent=11 // pred_fallthru
        _
      // Predicated region
      $region21: #{basic_forward_nchw.1} parent=11 // pred_check
        %p212 = pneg %p102
      $region22: #{basic_forward_nchw.1} parent=11 // pred_check_branch
        %214 = sbr.rel (%p212) target = $region24
      $region23: #{basic_forward_nchw.1} parent=11 // pred_region
        _
      $region24: #{basic_forward_nchw.1} parent=11 // pred_fallthru
        _
      // Predicated region
      $region25: #{basic_forward_nchw.1} parent=11 // pred_check
        %p215 = pneg %p123
      $region26: #{basic_forward_nchw.1} parent=11 // pred_check_branch
        %217 = sbr.rel (%p215) target = $region28
      $region27: #{basic_forward_nchw.1} parent=11 // pred_region
        _
      $region28: #{basic_forward_nchw.1} parent=11 // pred_fallthru
        _
      // Predicated region
      $region29: #{basic_forward_nchw.1} parent=11 // pred_check
        %p218 = pneg %p144
      $region30: #{basic_forward_nchw.1} parent=11 // pred_check_branch
        %220 = sbr.rel (%p218) target = $region32
      $region31: #{basic_forward_nchw.1} parent=11 // pred_region
        _
      $region32: #{basic_forward_nchw.1} parent=11 // pred_fallthru
        _
      // Predicated region
      $region33: #{basic_forward_nchw.1} parent=11 // pred_check
        %p221 = pneg %p165
      $region34: #{basic_forward_nchw.1} parent=11 // pred_check_branch
        %223 = sbr.rel (%p221) target = $region36
      $region35: #{basic_forward_nchw.1} parent=11 // pred_region
        _
      $region36: #{basic_forward_nchw.1} parent=11 // pred_fallthru
        _
    $region12: #{basic_forward_nchw.1} parent=5 // pred_fallthru
      _
    %p224 = scmp.lt.s32.totalorder %s13, 2
    // Predicated region
    $region37: #{basic_forward_nchw.1} parent=5 // pred_check
      %p225 = pneg %p224
    $region38: #{basic_forward_nchw.1} parent=5 // pred_check_branch
      %227 = sbr.rel (%p225) target = $region40
    $region39: #{basic_forward_nchw.1} parent=5 // pred_region
      // Predicated region
      $region41: #{basic_forward_nchw.1} parent=39 // pred_check
        %p228 = pneg %p33
      $region42: #{basic_forward_nchw.1} parent=39 // pred_check_branch
        %230 = sbr.rel (%p228) target = $region44
      $region43: #{basic_forward_nchw.1} parent=39 // pred_region
        %p231 = scmp.lt.s32.totalorder %s13, 1
        %s232 = scalar_select %p231, %s13, 1
        %s233 = smul.addr %s232, 2
        %s234 = smul.addr %s233, 8
        %s235 = scalar_lea.vmem %s0, %s234
      $region44: #{basic_forward_nchw.1} parent=39 // pred_fallthru
        _
    $region40: #{basic_forward_nchw.1} parent=5 // pred_fallthru
      _
    %p236 = scmp.le.s32.totalorder 1, %s13
    %p237 = scmp.lt.s32.totalorder %s13, 3
    %p238 = pnand %p236, %p237
    %p239 = pneg %p238
    // Predicated region
    $region45: #{basic_forward_nchw.1} parent=5 // pred_check
      _
    $region46: #{basic_forward_nchw.1} parent=5 // pred_check_branch
      %241 = sbr.rel (%p238) target = $region48
    $region47: #{basic_forward_nchw.1} parent=5 // pred_region
      %s242 = ssub.s32 %s13, 1
      %p243 = scmp.lt.s32.totalorder %s18, 1
      %s244 = scalar_select %p243, %s18, 1
      %s245 = smul.addr %s244, 2
      %s246 = smul.addr %s245, 8
      %s247 = scalar_lea.vmem %s0, %s246
      %p248 = pneg %p39
      %p249 = pneg %p36
      %p250 = pneg %p60
      %p251 = pneg %p57
      %p252 = pneg %p81
      %p253 = pneg %p78
      %p254 = pneg %p102
      %p255 = pneg %p99
      %p256 = pneg %p123
      %p257 = pneg %p120
      %p258 = pneg %p144
      %p259 = pneg %p141
      %p260 = pneg %p165
      %p261 = pneg %p162
      %p262 = pneg %p191
      %p263 = pneg %p188
      %p264 = scmp.lt.s32.totalorder %s18, 1
      %s265 = scalar_select %p264, %s18, 1
      %s266 = smul.addr %s265, 2
      %s267 = smul.addr %s266, 8
      %s268 = scalar_lea.vmem %s7, %s267
      %p269 = scmp.lt.s32.totalorder %s18, 1
      %s270 = scalar_select %p269, %s18, 1
      %s271 = smul.addr %s270, 2
      %s272 = smul.addr %s271, 8
      %s273 = scalar_lea.vmem %s0, %s272
      %p274 = scmp.lt.s32.totalorder %s18, 1
      %s275 = scalar_select %p274, %s18, 1
      %s276 = smul.addr %s275, 2
      %s277 = smul.addr %s276, 8
      %s278 = scalar_lea.vmem %s7, %s277
      %v279 = vld [vmem:[%s2] sm:$0x1]
      %v280 = vld [vmem:[%s4] sm:$0x1]
      %v281 = vld [vmem:[%s6] sm:$0x1]
      %282 = vst [vmem:[#allocation2] sm:$0x1] 0.0
      %283 = vst [vmem:[#allocation2 + $0x11] sm:$0x1] 0.0
      %v284 = vld [vmem:[%s273] sm:$0xff]
      %v285 = vld [vmem:[%s273 + $0x8] sm:$0xff]
      %vm286 = vcmask 523264
      %287 = vst.msk [vmem:[#allocation2 + $0x1] sm:$0xff] %vm286, %v284
      %288 = vst.msk [vmem:[#allocation2 + $0x9] sm:$0xff] %vm286, %v285
      %v289 = vld [vmem:[#allocation2] sm:$0xff]
      %v290 = vld [vmem:[#allocation2 + $0x8] sm:$0xff]
      %v291 = vld [vmem:[%s1] sm:$0xff]
      %v292 = vld [vmem:[%s1 + $0x8] sm:$0xff]
      %v293 = vld [vmem:[%s1 + $0x10] sm:$0xff]
      %v294 = vld [vmem:[%s1 + $0x18] sm:$0xff]
      %v295 = vld [vmem:[%s1 + $0x20] sm:$0xff]
      %v296 = vld [vmem:[%s1 + $0x28] sm:$0xff]
      %v297 = vld [vmem:[%s1 + $0x30] sm:$0xff]
      %v298 = vld [vmem:[%s1 + $0x38] sm:$0xff]
      %v299 = vld [vmem:[#allocation2 + $0x1] sm:$0xff]
      %v300 = vld [vmem:[#allocation2 + $0x9] sm:$0xff]
      %s301 = scalar_lea.vmem %s1, 64
      %v302 = vld [vmem:[%s301] sm:$0xff]
      %v303 = vld [vmem:[%s301 + $0x8] sm:$0xff]
      %v304 = vld [vmem:[%s301 + $0x10] sm:$0xff]
      %v305 = vld [vmem:[%s301 + $0x18] sm:$0xff]
      %v306 = vld [vmem:[%s301 + $0x20] sm:$0xff]
      %v307 = vld [vmem:[%s301 + $0x28] sm:$0xff]
      %v308 = vld [vmem:[%s301 + $0x30] sm:$0xff]
      %v309 = vld [vmem:[%s301 + $0x38] sm:$0xff]
      %v311 = vsel %vm286, %v299, 0
      %v314 = vsel %vm286, %v300, 0
      %316 = vmatprep.subr.mxu0 0.0
      %317 = vmatpush1.msra.mxu0 0.0
      %318 = vmatprep.subr.mxu0 0.0
      %319 = vmatpush1.msra.mxu0 0.0
      %320 = vmatprep.subr.mxu0 0.0
      %321 = vmatpush1.msra.mxu0 0.0
      %322 = vmatprep.subr.mxu0 0.0
      %323 = vmatpush1.msra.mxu0 0.0
      %324 = vmatprep.subr.mxu0 0.0
      %325 = vmatpush1.msra.mxu0 0.0
      %326 = vmatprep.subr.mxu0 0.0
      %327 = vmatpush1.msra.mxu0 0.0
      %328 = vmatprep.subr.mxu0 0.0
      %329 = vmatpush1.msra.mxu0 0.0
      %330 = vmatprep.subr.mxu0 0.0
      %331 = vmatpush1.msra.mxu0 0.0
      %332 = vmatprep.subr.mxu0 0.0
      %333 = vmatpush1.msra.mxu0 %v309
      %334 = vmatprep.subr.mxu0 0.0
      %335 = vmatpush1.msra.mxu0 %v308
      %336 = vmatprep.subr.mxu0 0.0
      %337 = vmatpush1.msra.mxu0 %v307
      %338 = vmatprep.subr.mxu0 0.0
      %339 = vmatpush1.msra.mxu0 %v306
      %340 = vmatprep.subr.mxu0 0.0
      %341 = vmatpush1.msra.mxu0 %v305
      %342 = vmatprep.subr.mxu0 0.0
      %343 = vmatpush1.msra.mxu0 %v304
      %344 = vmatprep.subr.mxu0 0.0
      %345 = vmatpush1.msra.mxu0 %v303
      %346 = vmatprep.subr.mxu0 0.0
      %347 = vmatpush1.msra.mxu0 %v302
      %348 = vmatprep.subr.mxu0 0.0
      %349 = vmatpush2.msra.mxu0 0.0
      %350 = vmatprep.subr.mxu0 0.0
      %351 = vmatpush2.msra.mxu0 0.0
      %352 = vmatprep.subr.mxu0 0.0
      %353 = vmatpush2.msra.mxu0 0.0
      %354 = vmatprep.subr.mxu0 0.0
      %355 = vmatpush2.msra.mxu0 0.0
      %356 = vmatprep.subr.mxu0 0.0
      %357 = vmatpush2.msra.mxu0 0.0
      %358 = vmatprep.subr.mxu0 0.0
      %359 = vmatpush2.msra.mxu0 0.0
      %360 = vmatprep.subr.mxu0 0.0
      %361 = vmatpush2.msra.mxu0 0.0
      %362 = vmatprep.subr.mxu0 0.0
      %363 = vmatpush2.msra.mxu0 0.0
      %364 = vmatprep.subr.mxu0 0.0
      %365 = vmatpush2.msra.mxu0 0.0
      %366 = vmatprep.subr.mxu0 0.0
      %367 = vmatpush2.msra.mxu0 0.0
      %368 = vmatprep.subr.mxu0 0.0
      %369 = vmatpush2.msra.mxu0 0.0
      %370 = vmatprep.subr.mxu0 0.0
      %371 = vmatpush2.msra.mxu0 0.0
      %372 = vmatprep.subr.mxu0 0.0
      %373 = vmatpush2.msra.mxu0 0.0
      %374 = vmatprep.subr.mxu0 0.0
      %375 = vmatpush2.msra.mxu0 0.0
      %376 = vmatprep.subr.mxu0 0.0
      %377 = vmatpush2.msra.mxu0 0.0
      %378 = vmatprep.subr.mxu0 0.0
      %379 = vmatpush2.msra.mxu0 0.0
      %380 = vmatprep.mubr.f32.mxu0 0.0
      %381 = vmatmul.mubr.f32.gmra.mxu0 %v311
      %v382 = vpop.f32.mrf.mxu0
      %v383 = vadd.f32 0.0, %v382
      %v384 = vpop.f32.mrf.mxu0
      %385 = vmatprep.mubr.f32.mxu0 0.0
      %386 = vmatmul.mubr.f32.gmra.mxu0 %v314
      %v387 = vpop.f32.mrf.mxu0
      %v388 = vadd.f32 0.0, %v387
      %v389 = vpop.f32.mrf.mxu0
      %390 = vdwg.mxu0
      %v392 = vsel %vm286, %v289, 0
      %v395 = vsel %vm286, %v290, 0
      %397 = vmatprep.subr.mxu0 0.0
      %398 = vmatpush1.msra.mxu0 0.0
      %399 = vmatprep.subr.mxu0 0.0
      %400 = vmatpush1.msra.mxu0 0.0
      %401 = vmatprep.subr.mxu0 0.0
      %402 = vmatpush1.msra.mxu0 0.0
      %403 = vmatprep.subr.mxu0 0.0
      %404 = vmatpush1.msra.mxu0 0.0
      %405 = vmatprep.subr.mxu0 0.0
      %406 = vmatpush1.msra.mxu0 0.0
      %407 = vmatprep.subr.mxu0 0.0
      %408 = vmatpush1.msra.mxu0 0.0
      %409 = vmatprep.subr.mxu0 0.0
      %410 = vmatpush1.msra.mxu0 0.0
      %411 = vmatprep.subr.mxu0 0.0
      %412 = vmatpush1.msra.mxu0 0.0
      %413 = vmatprep.subr.mxu0 0.0
      %414 = vmatpush1.msra.mxu0 %v298
      %415 = vmatprep.subr.mxu0 0.0
      %416 = vmatpush1.msra.mxu0 %v297
      %417 = vmatprep.subr.mxu0 0.0
      %418 = vmatpush1.msra.mxu0 %v296
      %419 = vmatprep.subr.mxu0 0.0
      %420 = vmatpush1.msra.mxu0 %v295
      %421 = vmatprep.subr.mxu0 0.0
      %422 = vmatpush1.msra.mxu0 %v294
      %423 = vmatprep.subr.mxu0 0.0
      %424 = vmatpush1.msra.mxu0 %v293
      %425 = vmatprep.subr.mxu0 0.0
      %426 = vmatpush1.msra.mxu0 %v292
      %427 = vmatprep.subr.mxu0 0.0
      %428 = vmatpush1.msra.mxu0 %v291
      %429 = vmatprep.subr.mxu0 0.0
      %430 = vmatpush2.msra.mxu0 0.0
      %431 = vmatprep.subr.mxu0 0.0
      %432 = vmatpush2.msra.mxu0 0.0
      %433 = vmatprep.subr.mxu0 0.0
      %434 = vmatpush2.msra.mxu0 0.0
      %435 = vmatprep.subr.mxu0 0.0
      %436 = vmatpush2.msra.mxu0 0.0
      %437 = vmatprep.subr.mxu0 0.0
      %438 = vmatpush2.msra.mxu0 0.0
      %439 = vmatprep.subr.mxu0 0.0
      %440 = vmatpush2.msra.mxu0 0.0
      %441 = vmatprep.subr.mxu0 0.0
      %442 = vmatpush2.msra.mxu0 0.0
      %443 = vmatprep.subr.mxu0 0.0
      %444 = vmatpush2.msra.mxu0 0.0
      %445 = vmatprep.subr.mxu0 0.0
      %446 = vmatpush2.msra.mxu0 0.0
      %447 = vmatprep.subr.mxu0 0.0
      %448 = vmatpush2.msra.mxu0 0.0
      %449 = vmatprep.subr.mxu0 0.0
      %450 = vmatpush2.msra.mxu0 0.0
      %451 = vmatprep.subr.mxu0 0.0
      %452 = vmatpush2.msra.mxu0 0.0
      %453 = vmatprep.subr.mxu0 0.0
      %454 = vmatpush2.msra.mxu0 0.0
      %455 = vmatprep.subr.mxu0 0.0
      %456 = vmatpush2.msra.mxu0 0.0
      %457 = vmatprep.subr.mxu0 0.0
      %458 = vmatpush2.msra.mxu0 0.0
      %459 = vmatprep.subr.mxu0 0.0
      %460 = vmatpush2.msra.mxu0 0.0
      %461 = vmatprep.mubr.f32.mxu0 0.0
      %462 = vmatmul.mubr.f32.gmra.mxu0 %v392
      %v463 = vpop.f32.mrf.mxu0
      %v464 = vadd.f32 %v383, %v463
      %v465 = vpop.f32.mrf.mxu0
      %466 = vmatprep.mubr.f32.mxu0 0.0
      %467 = vmatmul.mubr.f32.gmra.mxu0 %v395
      %v468 = vpop.f32.mrf.mxu0
      %v469 = vadd.f32 %v388, %v468
      %v470 = vpop.f32.mrf.mxu0
      %471 = vdwg.mxu0
      %v472 = vld [vmem:[#allocation2 + $0x2] sm:$0xff]
      %v473 = vld [vmem:[#allocation2 + $0xa] sm:$0xff]
      %s474 = scalar_lea.vmem %s1, 128
      %v475 = vld [vmem:[%s474] sm:$0xff]
      %v476 = vld [vmem:[%s474 + $0x8] sm:$0xff]
      %v477 = vld [vmem:[%s474 + $0x10] sm:$0xff]
      %v478 = vld [vmem:[%s474 + $0x18] sm:$0xff]
      %v479 = vld [vmem:[%s474 + $0x20] sm:$0xff]
      %v480 = vld [vmem:[%s474 + $0x28] sm:$0xff]
      %v481 = vld [vmem:[%s474 + $0x30] sm:$0xff]
      %v482 = vld [vmem:[%s474 + $0x38] sm:$0xff]
      %v484 = vsel %vm286, %v472, 0
      %v487 = vsel %vm286, %v473, 0
      %489 = vmatprep.subr.mxu0 0.0
      %490 = vmatpush1.msra.mxu0 0.0
      %491 = vmatprep.subr.mxu0 0.0
      %492 = vmatpush1.msra.mxu0 0.0
      %493 = vmatprep.subr.mxu0 0.0
      %494 = vmatpush1.msra.mxu0 0.0
      %495 = vmatprep.subr.mxu0 0.0
      %496 = vmatpush1.msra.mxu0 0.0
      %497 = vmatprep.subr.mxu0 0.0
      %498 = vmatpush1.msra.mxu0 0.0
      %499 = vmatprep.subr.mxu0 0.0
      %500 = vmatpush1.msra.mxu0 0.0
      %501 = vmatprep.subr.mxu0 0.0
      %502 = vmatpush1.msra.mxu0 0.0
      %503 = vmatprep.subr.mxu0 0.0
      %504 = vmatpush1.msra.mxu0 0.0
      %505 = vmatprep.subr.mxu0 0.0
      %506 = vmatpush1.msra.mxu0 %v482
      %507 = vmatprep.subr.mxu0 0.0
      %508 = vmatpush1.msra.mxu0 %v481
      %509 = vmatprep.subr.mxu0 0.0
      %510 = vmatpush1.msra.mxu0 %v480
      %511 = vmatprep.subr.mxu0 0.0
      %512 = vmatpush1.msra.mxu0 %v479
      %513 = vmatprep.subr.mxu0 0.0
      %514 = vmatpush1.msra.mxu0 %v478
      %515 = vmatprep.subr.mxu0 0.0
      %516 = vmatpush1.msra.mxu0 %v477
      %517 = vmatprep.subr.mxu0 0.0
      %518 = vmatpush1.msra.mxu0 %v476
      %519 = vmatprep.subr.mxu0 0.0
      %520 = vmatpush1.msra.mxu0 %v475
      %521 = vmatprep.subr.mxu0 0.0
      %522 = vmatpush2.msra.mxu0 0.0
      %523 = vmatprep.subr.mxu0 0.0
      %524 = vmatpush2.msra.mxu0 0.0
      %525 = vmatprep.subr.mxu0 0.0
      %526 = vmatpush2.msra.mxu0 0.0
      %527 = vmatprep.subr.mxu0 0.0
      %528 = vmatpush2.msra.mxu0 0.0
      %529 = vmatprep.subr.mxu0 0.0
      %530 = vmatpush2.msra.mxu0 0.0
      %531 = vmatprep.subr.mxu0 0.0
      %532 = vmatpush2.msra.mxu0 0.0
      %533 = vmatprep.subr.mxu0 0.0
      %534 = vmatpush2.msra.mxu0 0.0
      %535 = vmatprep.subr.mxu0 0.0
      %536 = vmatpush2.msra.mxu0 0.0
      %537 = vmatprep.subr.mxu0 0.0
      %538 = vmatpush2.msra.mxu0 0.0
      %539 = vmatprep.subr.mxu0 0.0
      %540 = vmatpush2.msra.mxu0 0.0
      %541 = vmatprep.subr.mxu0 0.0
      %542 = vmatpush2.msra.mxu0 0.0
      %543 = vmatprep.subr.mxu0 0.0
      %544 = vmatpush2.msra.mxu0 0.0
      %545 = vmatprep.subr.mxu0 0.0
      %546 = vmatpush2.msra.mxu0 0.0
      %547 = vmatprep.subr.mxu0 0.0
      %548 = vmatpush2.msra.mxu0 0.0
      %549 = vmatprep.subr.mxu0 0.0
      %550 = vmatpush2.msra.mxu0 0.0
      %551 = vmatprep.subr.mxu0 0.0
      %552 = vmatpush2.msra.mxu0 0.0
      %553 = vmatprep.mubr.f32.mxu0 0.0
      %554 = vmatmul.mubr.f32.gmra.mxu0 %v484
      %v555 = vpop.f32.mrf.mxu0
      %v556 = vadd.f32 0.0, %v555
      %v557 = vpop.f32.mrf.mxu0
      %558 = vmatprep.mubr.f32.mxu0 0.0
      %559 = vmatmul.mubr.f32.gmra.mxu0 %v487
      %v560 = vpop.f32.mrf.mxu0
      %v561 = vadd.f32 0.0, %v560
      %v562 = vpop.f32.mrf.mxu0
      %563 = vdwg.mxu0
      %v564 = vadd.f32 %v464, %v556
      %v565 = vadd.f32 %v469, %v561
      %v567 = vlaneseq
      %v568 = vshrl.u32 %v567, 7
      %v569 = vsub.s32 0, %v568
      %v570 = vrot.slane %v279, %v569
      %v572 = vadd.f32 %v564, %v570
      %v573 = vadd.f32 %v565, %v570
      %v574 = vmax.f32 %v572, 0.0
      %v575 = vmax.f32 %v573, 0.0
      %576 = vst [vmem:[#allocation2 + $0x1] sm:$0xff] %v574
      %577 = vst [vmem:[#allocation2 + $0x9] sm:$0xff] %v575
      %v578 = vld [vmem:[#allocation2] sm:$0xff]
      %v579 = vld [vmem:[#allocation2 + $0x8] sm:$0xff]
      %v580 = vld [vmem:[%s3] sm:$0xff]
      %v581 = vld [vmem:[%s3 + $0x8] sm:$0xff]
      %v582 = vld [vmem:[%s3 + $0x10] sm:$0xff]
      %v583 = vld [vmem:[%s3 + $0x18] sm:$0xff]
      %v584 = vld [vmem:[%s3 + $0x20] sm:$0xff]
      %v585 = vld [vmem:[%s3 + $0x28] sm:$0xff]
      %v586 = vld [vmem:[%s3 + $0x30] sm:$0xff]
      %v587 = vld [vmem:[%s3 + $0x38] sm:$0xff]
      %v588 = vld [vmem:[%s3 + $0x40] sm:$0xff]
      %v589 = vld [vmem:[%s3 + $0x48] sm:$0xff]
      %v590 = vld [vmem:[%s3 + $0x50] sm:$0xff]
      %v591 = vld [vmem:[%s3 + $0x58] sm:$0xff]
      %v592 = vld [vmem:[%s3 + $0x60] sm:$0xff]
      %v593 = vld [vmem:[%s3 + $0x68] sm:$0xff]
      %v594 = vld [vmem:[%s3 + $0x70] sm:$0xff]
      %v595 = vld [vmem:[%s3 + $0x78] sm:$0xff]
      %v596 = vld [vmem:[#allocation2 + $0x1] sm:$0xff]
      %v597 = vld [vmem:[#allocation2 + $0x9] sm:$0xff]
      %s598 = scalar_lea.vmem %s3, 128
      %v599 = vld [vmem:[%s598] sm:$0xff]
      %v600 = vld [vmem:[%s598 + $0x8] sm:$0xff]
      %v601 = vld [vmem:[%s598 + $0x10] sm:$0xff]
      %v602 = vld [vmem:[%s598 + $0x18] sm:$0xff]
      %v603 = vld [vmem:[%s598 + $0x20] sm:$0xff]
      %v604 = vld [vmem:[%s598 + $0x28] sm:$0xff]
      %v605 = vld [vmem:[%s598 + $0x30] sm:$0xff]
      %v606 = vld [vmem:[%s598 + $0x38] sm:$0xff]
      %v607 = vld [vmem:[%s598 + $0x40] sm:$0xff]
      %v608 = vld [vmem:[%s598 + $0x48] sm:$0xff]
      %v609 = vld [vmem:[%s598 + $0x50] sm:$0xff]
      %v610 = vld [vmem:[%s598 + $0x58] sm:$0xff]
      %v611 = vld [vmem:[%s598 + $0x60] sm:$0xff]
      %v612 = vld [vmem:[%s598 + $0x68] sm:$0xff]
      %v613 = vld [vmem:[%s598 + $0x70] sm:$0xff]
      %v614 = vld [vmem:[%s598 + $0x78] sm:$0xff]
      %615 = vmatprep.subr.mxu0 0.0
      %616 = vmatpush1.msra.mxu0 %v614
      %617 = vmatprep.subr.mxu0 0.0
      %618 = vmatpush1.msra.mxu0 %v613
      %619 = vmatprep.subr.mxu0 0.0
      %620 = vmatpush1.msra.mxu0 %v612
      %621 = vmatprep.subr.mxu0 0.0
      %622 = vmatpush1.msra.mxu0 %v611
      %623 = vmatprep.subr.mxu0 0.0
      %624 = vmatpush1.msra.mxu0 %v610
      %625 = vmatprep.subr.mxu0 0.0
      %626 = vmatpush1.msra.mxu0 %v609
      %627 = vmatprep.subr.mxu0 0.0
      %628 = vmatpush1.msra.mxu0 %v608
      %629 = vmatprep.subr.mxu0 0.0
      %630 = vmatpush1.msra.mxu0 %v607
      %631 = vmatprep.subr.mxu0 0.0
      %632 = vmatpush1.msra.mxu0 %v606
      %633 = vmatprep.subr.mxu0 0.0
      %634 = vmatpush1.msra.mxu0 %v605
      %635 = vmatprep.subr.mxu0 0.0
      %636 = vmatpush1.msra.mxu0 %v604
      %637 = vmatprep.subr.mxu0 0.0
      %638 = vmatpush1.msra.mxu0 %v603
      %639 = vmatprep.subr.mxu0 0.0
      %640 = vmatpush1.msra.mxu0 %v602
      %641 = vmatprep.subr.mxu0 0.0
      %642 = vmatpush1.msra.mxu0 %v601
      %643 = vmatprep.subr.mxu0 0.0
      %644 = vmatpush1.msra.mxu0 %v600
      %645 = vmatprep.subr.mxu0 0.0
      %646 = vmatpush1.msra.mxu0 %v599
      %647 = vmatprep.subr.mxu0 0.0
      %648 = vmatpush2.msra.mxu0 0.0
      %649 = vmatprep.subr.mxu0 0.0
      %650 = vmatpush2.msra.mxu0 0.0
      %651 = vmatprep.subr.mxu0 0.0
      %652 = vmatpush2.msra.mxu0 0.0
      %653 = vmatprep.subr.mxu0 0.0
      %654 = vmatpush2.msra.mxu0 0.0
      %655 = vmatprep.subr.mxu0 0.0
      %656 = vmatpush2.msra.mxu0 0.0
      %657 = vmatprep.subr.mxu0 0.0
      %658 = vmatpush2.msra.mxu0 0.0
      %659 = vmatprep.subr.mxu0 0.0
      %660 = vmatpush2.msra.mxu0 0.0
      %661 = vmatprep.subr.mxu0 0.0
      %662 = vmatpush2.msra.mxu0 0.0
      %663 = vmatprep.subr.mxu0 0.0
      %664 = vmatpush2.msra.mxu0 0.0
      %665 = vmatprep.subr.mxu0 0.0
      %666 = vmatpush2.msra.mxu0 0.0
      %667 = vmatprep.subr.mxu0 0.0
      %668 = vmatpush2.msra.mxu0 0.0
      %669 = vmatprep.subr.mxu0 0.0
      %670 = vmatpush2.msra.mxu0 0.0
      %671 = vmatprep.subr.mxu0 0.0
      %672 = vmatpush2.msra.mxu0 0.0
      %673 = vmatprep.subr.mxu0 0.0
      %674 = vmatpush2.msra.mxu0 0.0
      %675 = vmatprep.subr.mxu0 0.0
      %676 = vmatpush2.msra.mxu0 0.0
      %677 = vmatprep.subr.mxu0 0.0
      %678 = vmatpush2.msra.mxu0 0.0
      %679 = vmatprep.mubr.f32.mxu0 0.0
      %680 = vmatmul.mubr.f32.gmra.mxu0 %v596
      %v681 = vpop.f32.mrf.mxu0
      %v682 = vadd.f32 0.0, %v681
      %v683 = vpop.f32.mrf.mxu0
      %684 = vmatprep.mubr.f32.mxu0 0.0
      %685 = vmatmul.mubr.f32.gmra.mxu0 %v597
      %v686 = vpop.f32.mrf.mxu0
      %v687 = vadd.f32 0.0, %v686
      %v688 = vpop.f32.mrf.mxu0
      %689 = vdwg.mxu0
      %690 = vmatprep.subr.mxu0 0.0
      %691 = vmatpush1.msra.mxu0 %v595
      %692 = vmatprep.subr.mxu0 0.0
      %693 = vmatpush1.msra.mxu0 %v594
      %694 = vmatprep.subr.mxu0 0.0
      %695 = vmatpush1.msra.mxu0 %v593
      %696 = vmatprep.subr.mxu0 0.0
      %697 = vmatpush1.msra.mxu0 %v592
      %698 = vmatprep.subr.mxu0 0.0
      %699 = vmatpush1.msra.mxu0 %v591
      %700 = vmatprep.subr.mxu0 0.0
      %701 = vmatpush1.msra.mxu0 %v590
      %702 = vmatprep.subr.mxu0 0.0
      %703 = vmatpush1.msra.mxu0 %v589
      %704 = vmatprep.subr.mxu0 0.0
      %705 = vmatpush1.msra.mxu0 %v588
      %706 = vmatprep.subr.mxu0 0.0
      %707 = vmatpush1.msra.mxu0 %v587
      %708 = vmatprep.subr.mxu0 0.0
      %709 = vmatpush1.msra.mxu0 %v586
      %710 = vmatprep.subr.mxu0 0.0
      %711 = vmatpush1.msra.mxu0 %v585
      %712 = vmatprep.subr.mxu0 0.0
      %713 = vmatpush1.msra.mxu0 %v584
      %714 = vmatprep.subr.mxu0 0.0
      %715 = vmatpush1.msra.mxu0 %v583
      %716 = vmatprep.subr.mxu0 0.0
      %717 = vmatpush1.msra.mxu0 %v582
      %718 = vmatprep.subr.mxu0 0.0
      %719 = vmatpush1.msra.mxu0 %v581
      %720 = vmatprep.subr.mxu0 0.0
      %721 = vmatpush1.msra.mxu0 %v580
      %722 = vmatprep.subr.mxu0 0.0
      %723 = vmatpush2.msra.mxu0 0.0
      %724 = vmatprep.subr.mxu0 0.0
      %725 = vmatpush2.msra.mxu0 0.0
      %726 = vmatprep.subr.mxu0 0.0
      %727 = vmatpush2.msra.mxu0 0.0
      %728 = vmatprep.subr.mxu0 0.0
      %729 = vmatpush2.msra.mxu0 0.0
      %730 = vmatprep.subr.mxu0 0.0
      %731 = vmatpush2.msra.mxu0 0.0
      %732 = vmatprep.subr.mxu0 0.0
      %733 = vmatpush2.msra.mxu0 0.0
      %734 = vmatprep.subr.mxu0 0.0
      %735 = vmatpush2.msra.mxu0 0.0
      %736 = vmatprep.subr.mxu0 0.0
      %737 = vmatpush2.msra.mxu0 0.0
      %738 = vmatprep.subr.mxu0 0.0
      %739 = vmatpush2.msra.mxu0 0.0
      %740 = vmatprep.subr.mxu0 0.0
      %741 = vmatpush2.msra.mxu0 0.0
      %742 = vmatprep.subr.mxu0 0.0
      %743 = vmatpush2.msra.mxu0 0.0
      %744 = vmatprep.subr.mxu0 0.0
      %745 = vmatpush2.msra.mxu0 0.0
      %746 = vmatprep.subr.mxu0 0.0
      %747 = vmatpush2.msra.mxu0 0.0
      %748 = vmatprep.subr.mxu0 0.0
      %749 = vmatpush2.msra.mxu0 0.0
      %750 = vmatprep.subr.mxu0 0.0
      %751 = vmatpush2.msra.mxu0 0.0
      %752 = vmatprep.subr.mxu0 0.0
      %753 = vmatpush2.msra.mxu0 0.0
      %754 = vmatprep.mubr.f32.mxu0 0.0
      %755 = vmatmul.mubr.f32.gmra.mxu0 %v578
      %v756 = vpop.f32.mrf.mxu0
      %v757 = vadd.f32 %v682, %v756
      %v758 = vpop.f32.mrf.mxu0
      %759 = vmatprep.mubr.f32.mxu0 0.0
      %760 = vmatmul.mubr.f32.gmra.mxu0 %v579
      %v761 = vpop.f32.mrf.mxu0
      %v762 = vadd.f32 %v687, %v761
      %v763 = vpop.f32.mrf.mxu0
      %764 = vdwg.mxu0
      %v765 = vld [vmem:[#allocation2 + $0x2] sm:$0xff]
      %v766 = vld [vmem:[#allocation2 + $0xa] sm:$0xff]
      %s767 = scalar_lea.vmem %s3, 256
      %v768 = vld [vmem:[%s767] sm:$0xff]
      %v769 = vld [vmem:[%s767 + $0x8] sm:$0xff]
      %v770 = vld [vmem:[%s767 + $0x10] sm:$0xff]
      %v771 = vld [vmem:[%s767 + $0x18] sm:$0xff]
      %v772 = vld [vmem:[%s767 + $0x20] sm:$0xff]
      %v773 = vld [vmem:[%s767 + $0x28] sm:$0xff]
      %v774 = vld [vmem:[%s767 + $0x30] sm:$0xff]
      %v775 = vld [vmem:[%s767 + $0x38] sm:$0xff]
      %v776 = vld [vmem:[%s767 + $0x40] sm:$0xff]
      %v777 = vld [vmem:[%s767 + $0x48] sm:$0xff]
      %v778 = vld [vmem:[%s767 + $0x50] sm:$0xff]
      %v779 = vld [vmem:[%s767 + $0x58] sm:$0xff]
      %v780 = vld [vmem:[%s767 + $0x60] sm:$0xff]
      %v781 = vld [vmem:[%s767 + $0x68] sm:$0xff]
      %v782 = vld [vmem:[%s767 + $0x70] sm:$0xff]
      %v783 = vld [vmem:[%s767 + $0x78] sm:$0xff]
      %784 = vmatprep.subr.mxu0 0.0
      %785 = vmatpush1.msra.mxu0 %v783
      %786 = vmatprep.subr.mxu0 0.0
      %787 = vmatpush1.msra.mxu0 %v782
      %788 = vmatprep.subr.mxu0 0.0
      %789 = vmatpush1.msra.mxu0 %v781
      %790 = vmatprep.subr.mxu0 0.0
      %791 = vmatpush1.msra.mxu0 %v780
      %792 = vmatprep.subr.mxu0 0.0
      %793 = vmatpush1.msra.mxu0 %v779
      %794 = vmatprep.subr.mxu0 0.0
      %795 = vmatpush1.msra.mxu0 %v778
      %796 = vmatprep.subr.mxu0 0.0
      %797 = vmatpush1.msra.mxu0 %v777
      %798 = vmatprep.subr.mxu0 0.0
      %799 = vmatpush1.msra.mxu0 %v776
      %800 = vmatprep.subr.mxu0 0.0
      %801 = vmatpush1.msra.mxu0 %v775
      %802 = vmatprep.subr.mxu0 0.0
      %803 = vmatpush1.msra.mxu0 %v774
      %804 = vmatprep.subr.mxu0 0.0
      %805 = vmatpush1.msra.mxu0 %v773
      %806 = vmatprep.subr.mxu0 0.0
      %807 = vmatpush1.msra.mxu0 %v772
      %808 = vmatprep.subr.mxu0 0.0
      %809 = vmatpush1.msra.mxu0 %v771
      %810 = vmatprep.subr.mxu0 0.0
      %811 = vmatpush1.msra.mxu0 %v770
      %812 = vmatprep.subr.mxu0 0.0
      %813 = vmatpush1.msra.mxu0 %v769
      %814 = vmatprep.subr.mxu0 0.0
      %815 = vmatpush1.msra.mxu0 %v768
      %816 = vmatprep.subr.mxu0 0.0
      %817 = vmatpush2.msra.mxu0 0.0
      %818 = vmatprep.subr.mxu0 0.0
      %819 = vmatpush2.msra.mxu0 0.0
      %820 = vmatprep.subr.mxu0 0.0
      %821 = vmatpush2.msra.mxu0 0.0
      %822 = vmatprep.subr.mxu0 0.0
      %823 = vmatpush2.msra.mxu0 0.0
      %824 = vmatprep.subr.mxu0 0.0
      %825 = vmatpush2.msra.mxu0 0.0
      %826 = vmatprep.subr.mxu0 0.0
      %827 = vmatpush2.msra.mxu0 0.0
      %828 = vmatprep.subr.mxu0 0.0
      %829 = vmatpush2.msra.mxu0 0.0
      %830 = vmatprep.subr.mxu0 0.0
      %831 = vmatpush2.msra.mxu0 0.0
      %832 = vmatprep.subr.mxu0 0.0
      %833 = vmatpush2.msra.mxu0 0.0
      %834 = vmatprep.subr.mxu0 0.0
      %835 = vmatpush2.msra.mxu0 0.0
      %836 = vmatprep.subr.mxu0 0.0
      %837 = vmatpush2.msra.mxu0 0.0
      %838 = vmatprep.subr.mxu0 0.0
      %839 = vmatpush2.msra.mxu0 0.0
      %840 = vmatprep.subr.mxu0 0.0
      %841 = vmatpush2.msra.mxu0 0.0
      %842 = vmatprep.subr.mxu0 0.0
      %843 = vmatpush2.msra.mxu0 0.0
      %844 = vmatprep.subr.mxu0 0.0
      %845 = vmatpush2.msra.mxu0 0.0
      %846 = vmatprep.subr.mxu0 0.0
      %847 = vmatpush2.msra.mxu0 0.0
      %848 = vmatprep.mubr.f32.mxu0 0.0
      %849 = vmatmul.mubr.f32.gmra.mxu0 %v765
      %v850 = vpop.f32.mrf.mxu0
      %v851 = vadd.f32 0.0, %v850
      %v852 = vpop.f32.mrf.mxu0
      %853 = vmatprep.mubr.f32.mxu0 0.0
      %854 = vmatmul.mubr.f32.gmra.mxu0 %v766
      %v855 = vpop.f32.mrf.mxu0
      %v856 = vadd.f32 0.0, %v855
      %v857 = vpop.f32.mrf.mxu0
      %858 = vdwg.mxu0
      %v859 = vadd.f32 %v757, %v851
      %v860 = vadd.f32 %v762, %v856
      %v862 = vlaneseq
      %v863 = vshrl.u32 %v862, 7
      %v864 = vsub.s32 0, %v863
      %v865 = vrot.slane %v280, %v864
      %v867 = vadd.f32 %v859, %v865
      %v868 = vadd.f32 %v860, %v865
      %v869 = vmax.f32 %v867, 0.0
      %v870 = vmax.f32 %v868, 0.0
      %871 = vst [vmem:[#allocation2 + $0x1] sm:$0xff] %v869
      %872 = vst [vmem:[#allocation2 + $0x9] sm:$0xff] %v870
      %v873 = vld [vmem:[#allocation2] sm:$0xff]
      %v874 = vld [vmem:[#allocation2 + $0x8] sm:$0xff]
      %v875 = vld [vmem:[%s5] sm:$0xff]
      %v876 = vld [vmem:[%s5 + $0x8] sm:$0xff]
      %v877 = vld [vmem:[%s5 + $0x10] sm:$0xff]
      %v878 = vld [vmem:[%s5 + $0x18] sm:$0xff]
      %v879 = vld [vmem:[%s5 + $0x20] sm:$0xff]
      %v880 = vld [vmem:[%s5 + $0x28] sm:$0xff]
      %v881 = vld [vmem:[%s5 + $0x30] sm:$0xff]
      %v882 = vld [vmem:[%s5 + $0x38] sm:$0xff]
      %v883 = vld [vmem:[%s5 + $0x40] sm:$0xff]
      %v884 = vld [vmem:[%s5 + $0x48] sm:$0xff]
      %v885 = vld [vmem:[%s5 + $0x50] sm:$0xff]
      %v886 = vld [vmem:[%s5 + $0x58] sm:$0xff]
      %v887 = vld [vmem:[%s5 + $0x60] sm:$0xff]
      %v888 = vld [vmem:[%s5 + $0x68] sm:$0xff]
      %v889 = vld [vmem:[%s5 + $0x70] sm:$0xff]
      %v890 = vld [vmem:[%s5 + $0x78] sm:$0xff]
      %v891 = vld [vmem:[#allocation2 + $0x1] sm:$0xff]
      %v892 = vld [vmem:[#allocation2 + $0x9] sm:$0xff]
      %s893 = scalar_lea.vmem %s5, 128
      %v894 = vld [vmem:[%s893] sm:$0xff]
      %v895 = vld [vmem:[%s893 + $0x8] sm:$0xff]
      %v896 = vld [vmem:[%s893 + $0x10] sm:$0xff]
      %v897 = vld [vmem:[%s893 + $0x18] sm:$0xff]
      %v898 = vld [vmem:[%s893 + $0x20] sm:$0xff]
      %v899 = vld [vmem:[%s893 + $0x28] sm:$0xff]
      %v900 = vld [vmem:[%s893 + $0x30] sm:$0xff]
      %v901 = vld [vmem:[%s893 + $0x38] sm:$0xff]
      %v902 = vld [vmem:[%s893 + $0x40] sm:$0xff]
      %v903 = vld [vmem:[%s893 + $0x48] sm:$0xff]
      %v904 = vld [vmem:[%s893 + $0x50] sm:$0xff]
      %v905 = vld [vmem:[%s893 + $0x58] sm:$0xff]
      %v906 = vld [vmem:[%s893 + $0x60] sm:$0xff]
      %v907 = vld [vmem:[%s893 + $0x68] sm:$0xff]
      %v908 = vld [vmem:[%s893 + $0x70] sm:$0xff]
      %v909 = vld [vmem:[%s893 + $0x78] sm:$0xff]
      %910 = vmatprep.subr.mxu0 0.0
      %911 = vmatpush1.msra.mxu0 %v909
      %912 = vmatprep.subr.mxu0 0.0
      %913 = vmatpush1.msra.mxu0 %v908
      %914 = vmatprep.subr.mxu0 0.0
      %915 = vmatpush1.msra.mxu0 %v907
      %916 = vmatprep.subr.mxu0 0.0
      %917 = vmatpush1.msra.mxu0 %v906
      %918 = vmatprep.subr.mxu0 0.0
      %919 = vmatpush1.msra.mxu0 %v905
      %920 = vmatprep.subr.mxu0 0.0
      %921 = vmatpush1.msra.mxu0 %v904
      %922 = vmatprep.subr.mxu0 0.0
      %923 = vmatpush1.msra.mxu0 %v903
      %924 = vmatprep.subr.mxu0 0.0
      %925 = vmatpush1.msra.mxu0 %v902
      %926 = vmatprep.subr.mxu0 0.0
      %927 = vmatpush1.msra.mxu0 %v901
      %928 = vmatprep.subr.mxu0 0.0
      %929 = vmatpush1.msra.mxu0 %v900
      %930 = vmatprep.subr.mxu0 0.0
      %931 = vmatpush1.msra.mxu0 %v899
      %932 = vmatprep.subr.mxu0 0.0
      %933 = vmatpush1.msra.mxu0 %v898
      %934 = vmatprep.subr.mxu0 0.0
      %935 = vmatpush1.msra.mxu0 %v897
      %936 = vmatprep.subr.mxu0 0.0
      %937 = vmatpush1.msra.mxu0 %v896
      %938 = vmatprep.subr.mxu0 0.0
      %939 = vmatpush1.msra.mxu0 %v895
      %940 = vmatprep.subr.mxu0 0.0
      %941 = vmatpush1.msra.mxu0 %v894
      %942 = vmatprep.subr.mxu0 0.0
      %943 = vmatpush2.msra.mxu0 0.0
      %944 = vmatprep.subr.mxu0 0.0
      %945 = vmatpush2.msra.mxu0 0.0
      %946 = vmatprep.subr.mxu0 0.0
      %947 = vmatpush2.msra.mxu0 0.0
      %948 = vmatprep.subr.mxu0 0.0
      %949 = vmatpush2.msra.mxu0 0.0
      %950 = vmatprep.subr.mxu0 0.0
      %951 = vmatpush2.msra.mxu0 0.0
      %952 = vmatprep.subr.mxu0 0.0
      %953 = vmatpush2.msra.mxu0 0.0
      %954 = vmatprep.subr.mxu0 0.0
      %955 = vmatpush2.msra.mxu0 0.0
      %956 = vmatprep.subr.mxu0 0.0
      %957 = vmatpush2.msra.mxu0 0.0
      %958 = vmatprep.subr.mxu0 0.0
      %959 = vmatpush2.msra.mxu0 0.0
      %960 = vmatprep.subr.mxu0 0.0
      %961 = vmatpush2.msra.mxu0 0.0
      %962 = vmatprep.subr.mxu0 0.0
      %963 = vmatpush2.msra.mxu0 0.0
      %964 = vmatprep.subr.mxu0 0.0
      %965 = vmatpush2.msra.mxu0 0.0
      %966 = vmatprep.subr.mxu0 0.0
      %967 = vmatpush2.msra.mxu0 0.0
      %968 = vmatprep.subr.mxu0 0.0
      %969 = vmatpush2.msra.mxu0 0.0
      %970 = vmatprep.subr.mxu0 0.0
      %971 = vmatpush2.msra.mxu0 0.0
      %972 = vmatprep.subr.mxu0 0.0
      %973 = vmatpush2.msra.mxu0 0.0
      %974 = vmatprep.mubr.f32.mxu0 0.0
      %975 = vmatmul.mubr.f32.gmra.mxu0 %v891
      %v976 = vpop.f32.mrf.mxu0
      %v977 = vadd.f32 0.0, %v976
      %v978 = vpop.f32.mrf.mxu0
      %979 = vmatprep.mubr.f32.mxu0 0.0
      %980 = vmatmul.mubr.f32.gmra.mxu0 %v892
      %v981 = vpop.f32.mrf.mxu0
      %v982 = vadd.f32 0.0, %v981
      %v983 = vpop.f32.mrf.mxu0
      %984 = vdwg.mxu0
      %985 = vmatprep.subr.mxu0 0.0
      %986 = vmatpush1.msra.mxu0 %v890
      %987 = vmatprep.subr.mxu0 0.0
      %988 = vmatpush1.msra.mxu0 %v889
      %989 = vmatprep.subr.mxu0 0.0
      %990 = vmatpush1.msra.mxu0 %v888
      %991 = vmatprep.subr.mxu0 0.0
      %992 = vmatpush1.msra.mxu0 %v887
      %993 = vmatprep.subr.mxu0 0.0
      %994 = vmatpush1.msra.mxu0 %v886
      %995 = vmatprep.subr.mxu0 0.0
      %996 = vmatpush1.msra.mxu0 %v885
      %997 = vmatprep.subr.mxu0 0.0
      %998 = vmatpush1.msra.mxu0 %v884
      %999 = vmatprep.subr.mxu0 0.0
      %1000 = vmatpush1.msra.mxu0 %v883
      %1001 = vmatprep.subr.mxu0 0.0
      %1002 = vmatpush1.msra.mxu0 %v882
      %1003 = vmatprep.subr.mxu0 0.0
      %1004 = vmatpush1.msra.mxu0 %v881
      %1005 = vmatprep.subr.mxu0 0.0
      %1006 = vmatpush1.msra.mxu0 %v880
      %1007 = vmatprep.subr.mxu0 0.0
      %1008 = vmatpush1.msra.mxu0 %v879
      %1009 = vmatprep.subr.mxu0 0.0
      %1010 = vmatpush1.msra.mxu0 %v878
      %1011 = vmatprep.subr.mxu0 0.0
      %1012 = vmatpush1.msra.mxu0 %v877
      %1013 = vmatprep.subr.mxu0 0.0
      %1014 = vmatpush1.msra.mxu0 %v876
      %1015 = vmatprep.subr.mxu0 0.0
      %1016 = vmatpush1.msra.mxu0 %v875
      %1017 = vmatprep.subr.mxu0 0.0
      %1018 = vmatpush2.msra.mxu0 0.0
      %1019 = vmatprep.subr.mxu0 0.0
      %1020 = vmatpush2.msra.mxu0 0.0
      %1021 = vmatprep.subr.mxu0 0.0
      %1022 = vmatpush2.msra.mxu0 0.0
      %1023 = vmatprep.subr.mxu0 0.0
      %1024 = vmatpush2.msra.mxu0 0.0
      %1025 = vmatprep.subr.mxu0 0.0
      %1026 = vmatpush2.msra.mxu0 0.0
      %1027 = vmatprep.subr.mxu0 0.0
      %1028 = vmatpush2.msra.mxu0 0.0
      %1029 = vmatprep.subr.mxu0 0.0
      %1030 = vmatpush2.msra.mxu0 0.0
      %1031 = vmatprep.subr.mxu0 0.0
      %1032 = vmatpush2.msra.mxu0 0.0
      %1033 = vmatprep.subr.mxu0 0.0
      %1034 = vmatpush2.msra.mxu0 0.0
      %1035 = vmatprep.subr.mxu0 0.0
      %1036 = vmatpush2.msra.mxu0 0.0
      %1037 = vmatprep.subr.mxu0 0.0
      %1038 = vmatpush2.msra.mxu0 0.0
      %1039 = vmatprep.subr.mxu0 0.0
      %1040 = vmatpush2.msra.mxu0 0.0
      %1041 = vmatprep.subr.mxu0 0.0
      %1042 = vmatpush2.msra.mxu0 0.0
      %1043 = vmatprep.subr.mxu0 0.0
      %1044 = vmatpush2.msra.mxu0 0.0
      %1045 = vmatprep.subr.mxu0 0.0
      %1046 = vmatpush2.msra.mxu0 0.0
      %1047 = vmatprep.subr.mxu0 0.0
      %1048 = vmatpush2.msra.mxu0 0.0
      %1049 = vmatprep.mubr.f32.mxu0 0.0
      %1050 = vmatmul.mubr.f32.gmra.mxu0 %v873
      %v1051 = vpop.f32.mrf.mxu0
      %v1052 = vadd.f32 %v977, %v1051
      %v1053 = vpop.f32.mrf.mxu0
      %1054 = vmatprep.mubr.f32.mxu0 0.0
      %1055 = vmatmul.mubr.f32.gmra.mxu0 %v874
      %v1056 = vpop.f32.mrf.mxu0
      %v1057 = vadd.f32 %v982, %v1056
      %v1058 = vpop.f32.mrf.mxu0
      %1059 = vdwg.mxu0
      %v1060 = vld [vmem:[#allocation2 + $0x2] sm:$0xff]
      %v1061 = vld [vmem:[#allocation2 + $0xa] sm:$0xff]
      %s1062 = scalar_lea.vmem %s5, 256
      %v1063 = vld [vmem:[%s1062] sm:$0xff]
      %v1064 = vld [vmem:[%s1062 + $0x8] sm:$0xff]
      %v1065 = vld [vmem:[%s1062 + $0x10] sm:$0xff]
      %v1066 = vld [vmem:[%s1062 + $0x18] sm:$0xff]
      %v1067 = vld [vmem:[%s1062 + $0x20] sm:$0xff]
      %v1068 = vld [vmem:[%s1062 + $0x28] sm:$0xff]
      %v1069 = vld [vmem:[%s1062 + $0x30] sm:$0xff]
      %v1070 = vld [vmem:[%s1062 + $0x38] sm:$0xff]
      %v1071 = vld [vmem:[%s1062 + $0x40] sm:$0xff]
      %v1072 = vld [vmem:[%s1062 + $0x48] sm:$0xff]
      %v1073 = vld [vmem:[%s1062 + $0x50] sm:$0xff]
      %v1074 = vld [vmem:[%s1062 + $0x58] sm:$0xff]
      %v1075 = vld [vmem:[%s1062 + $0x60] sm:$0xff]
      %v1076 = vld [vmem:[%s1062 + $0x68] sm:$0xff]
      %v1077 = vld [vmem:[%s1062 + $0x70] sm:$0xff]
      %v1078 = vld [vmem:[%s1062 + $0x78] sm:$0xff]
      %1079 = vmatprep.subr.mxu0 0.0
      %1080 = vmatpush1.msra.mxu0 %v1078
      %1081 = vmatprep.subr.mxu0 0.0
      %1082 = vmatpush1.msra.mxu0 %v1077
      %1083 = vmatprep.subr.mxu0 0.0
      %1084 = vmatpush1.msra.mxu0 %v1076
      %1085 = vmatprep.subr.mxu0 0.0
      %1086 = vmatpush1.msra.mxu0 %v1075
      %1087 = vmatprep.subr.mxu0 0.0
      %1088 = vmatpush1.msra.mxu0 %v1074
      %1089 = vmatprep.subr.mxu0 0.0
      %1090 = vmatpush1.msra.mxu0 %v1073
      %1091 = vmatprep.subr.mxu0 0.0
      %1092 = vmatpush1.msra.mxu0 %v1072
      %1093 = vmatprep.subr.mxu0 0.0
      %1094 = vmatpush1.msra.mxu0 %v1071
      %1095 = vmatprep.subr.mxu0 0.0
      %1096 = vmatpush1.msra.mxu0 %v1070
      %1097 = vmatprep.subr.mxu0 0.0
      %1098 = vmatpush1.msra.mxu0 %v1069
      %1099 = vmatprep.subr.mxu0 0.0
      %1100 = vmatpush1.msra.mxu0 %v1068
      %1101 = vmatprep.subr.mxu0 0.0
      %1102 = vmatpush1.msra.mxu0 %v1067
      %1103 = vmatprep.subr.mxu0 0.0
      %1104 = vmatpush1.msra.mxu0 %v1066
      %1105 = vmatprep.subr.mxu0 0.0
      %1106 = vmatpush1.msra.mxu0 %v1065
      %1107 = vmatprep.subr.mxu0 0.0
      %1108 = vmatpush1.msra.mxu0 %v1064
      %1109 = vmatprep.subr.mxu0 0.0
      %1110 = vmatpush1.msra.mxu0 %v1063
      %1111 = vmatprep.subr.mxu0 0.0
      %1112 = vmatpush2.msra.mxu0 0.0
      %1113 = vmatprep.subr.mxu0 0.0
      %1114 = vmatpush2.msra.mxu0 0.0
      %1115 = vmatprep.subr.mxu0 0.0
      %1116 = vmatpush2.msra.mxu0 0.0
      %1117 = vmatprep.subr.mxu0 0.0
      %1118 = vmatpush2.msra.mxu0 0.0
      %1119 = vmatprep.subr.mxu0 0.0
      %1120 = vmatpush2.msra.mxu0 0.0
      %1121 = vmatprep.subr.mxu0 0.0
      %1122 = vmatpush2.msra.mxu0 0.0
      %1123 = vmatprep.subr.mxu0 0.0
      %1124 = vmatpush2.msra.mxu0 0.0
      %1125 = vmatprep.subr.mxu0 0.0
      %1126 = vmatpush2.msra.mxu0 0.0
      %1127 = vmatprep.subr.mxu0 0.0
      %1128 = vmatpush2.msra.mxu0 0.0
      %1129 = vmatprep.subr.mxu0 0.0
      %1130 = vmatpush2.msra.mxu0 0.0
      %1131 = vmatprep.subr.mxu0 0.0
      %1132 = vmatpush2.msra.mxu0 0.0
      %1133 = vmatprep.subr.mxu0 0.0
      %1134 = vmatpush2.msra.mxu0 0.0
      %1135 = vmatprep.subr.mxu0 0.0
      %1136 = vmatpush2.msra.mxu0 0.0
      %1137 = vmatprep.subr.mxu0 0.0
      %1138 = vmatpush2.msra.mxu0 0.0
      %1139 = vmatprep.subr.mxu0 0.0
      %1140 = vmatpush2.msra.mxu0 0.0
      %1141 = vmatprep.subr.mxu0 0.0
      %1142 = vmatpush2.msra.mxu0 0.0
      %1143 = vmatprep.mubr.f32.mxu0 0.0
      %1144 = vmatmul.mubr.f32.gmra.mxu0 %v1060
      %v1145 = vpop.f32.mrf.mxu0
      %v1146 = vadd.f32 0.0, %v1145
      %v1147 = vpop.f32.mrf.mxu0
      %1148 = vmatprep.mubr.f32.mxu0 0.0
      %1149 = vmatmul.mubr.f32.gmra.mxu0 %v1061
      %v1150 = vpop.f32.mrf.mxu0
      %v1151 = vadd.f32 0.0, %v1150
      %v1152 = vpop.f32.mrf.mxu0
      %1153 = vdwg.mxu0
      %v1154 = vadd.f32 %v1052, %v1146
      %v1155 = vadd.f32 %v1057, %v1151
      %v1157 = vlaneseq
      %v1158 = vshrl.u32 %v1157, 7
      %v1159 = vsub.s32 0, %v1158
      %v1160 = vrot.slane %v281, %v1159
      %v1162 = vadd.f32 %v1154, %v1160
      %v1163 = vadd.f32 %v1155, %v1160
      %v1164 = vmax.f32 %v1162, 0.0
      %v1165 = vmax.f32 %v1163, 0.0
      %1166 = vst [vmem:[%s278] sm:$0xff] %v1164
      %1167 = vst [vmem:[%s278 + $0x8] sm:$0xff] %v1165
      %p1168 = scmp.lt.s32.totalorder %s18, 1
      %s1169 = scalar_select %p1168, %s18, 1
      %s1170 = smul.addr %s1169, 2
      %s1171 = smul.addr %s1170, 8
      %s1172 = scalar_lea.vmem %s7, %s1171
      // Predicated region
      $region49: #{basic_forward_nchw.1} parent=47 // pred_check
        %p1173 = pneg %p188
      $region50: #{basic_forward_nchw.1} parent=47 // pred_check_branch
        %1175 = sbr.rel (%p1173) target = $region52
      $region51: #{basic_forward_nchw.1} parent=47 // pred_region
        _
      $region52: #{basic_forward_nchw.1} parent=47 // pred_fallthru
        _
    $region48: #{basic_forward_nchw.1} parent=5 // pred_fallthru
      _
    %p1176 = scmp.le.s32.totalorder 2, %s13
    // Predicated region
    $region53: #{basic_forward_nchw.1} parent=5 // pred_check
      %p1177 = pneg %p1176
    $region54: #{basic_forward_nchw.1} parent=5 // pred_check_branch
      %1179 = sbr.rel (%p1177) target = $region56
    $region55: #{basic_forward_nchw.1} parent=5 // pred_region
      %s1180 = ssub.s32 %s13, 2
      // Predicated region
      $region57: #{basic_forward_nchw.1} parent=55 // pred_check
        %p1181 = pneg %p194
      $region58: #{basic_forward_nchw.1} parent=55 // pred_check_branch
        %1183 = sbr.rel (%p1181) target = $region60
      $region59: #{basic_forward_nchw.1} parent=55 // pred_region
        %p1184 = scmp.lt.s32.totalorder %s19, 1
        %s1185 = scalar_select %p1184, %s19, 1
        %s1186 = smul.addr %s1185, 2
        %s1187 = smul.addr %s1186, 8
        %s1188 = scalar_lea.vmem %s7, %s1187
      $region60: #{basic_forward_nchw.1} parent=55 // pred_fallthru
        _
    $region56: #{basic_forward_nchw.1} parent=5 // pred_fallthru
      _
  $region6: #{basic_forward_nchw.1} parent=0 // loop_footer
    %s17 = sadd.s32 1, %s13
  $region7: #{basic_forward_nchw.1} parent=0 // loop_footer_branch
    %12 = sbr.rel target = $region3
  $region8: #{basic_forward_nchw.1} parent=0 // loop_exit
    _

</llo_original>
